<compile_context>
chip_gen: v7x
topology: tpu7x:2x2x1
jax: 0.10.0
libtpu: 0.0.40
codegen_flags: <defaults>
</compile_context>

<pallas_src>
import functools

import jax
import jax.numpy as jnp
from jax import lax
from jax.experimental import pallas as pl
from jax.experimental.pallas import tpu as pltpu

NUM_CLASSES = 7          # "...7Class"
STEM_C = 24              # EfficientNetV2-S stem width
STEM_CP = 128            # stem channels zero-padded -> lane-dense K for head matmul
HEAD_C = 1280            # EfficientNetV2-S head width (classifier.in_features)
CLS_P = 128              # classifier output padded to 128 lanes (first 7 valid)
FC_HIDDEN = 10           # nn.Linear(2*num_classes, 10)


def _round_up(a, b):
    return (a + b - 1) // b * b


@functools.lru_cache(maxsize=1)
def _hw_config():
    """Generation-specific knobs: elementwise dtype, tile cap, VMEM budget."""
    try:
        kind = jax.devices()[0].device_kind.lower()
    except Exception:
        kind = ""
    if "v5 lite" in kind or "v5e" in kind or "v5litepod" in kind:
        # v5e: no bf16 VPU/EUP -> keep elementwise f32; 128 MiB physical VMEM.
        return dict(ew_bf16=False, tile_cap=2048, vmem_bytes=64 * 1024 * 1024)
    if "v7" in kind:
        # v7x: 64 MiB physical VMEM -> smaller tiles, stay within 32 MiB scoped.
        return dict(ew_bf16=True, tile_cap=1024, vmem_bytes=32 * 1024 * 1024)
    # v6e and default: bf16 VPU/EUP, 128 MiB physical VMEM.
    return dict(ew_bf16=True, tile_cap=2048, vmem_bytes=64 * 1024 * 1024)


# ---------------------------------------------------------------------------
# Fused backbone kernel.
# Grid: (image, spatial_tile).  pooled_acc is a per-image VMEM accumulator for
# the global-average-pool partial sums across spatial tiles.
# ---------------------------------------------------------------------------
def _backbone_kernel(patches_ref, stem_w_ref, stem_shift_ref,
                     head_w_ref, head_shift_ref, cls_w_ref, cls_b_ref,
                     out_ref, pooled_acc, *, tile_p, p_total, ew_bf16):
    t = pl.program_id(1)

    @pl.when(t == 0)
    def _():
        pooled_acc[...] = jnp.zeros_like(pooled_acc)

    # Stem conv as im2col matmul (BN scale pre-folded into the bf16 weights),
    # shift + SiLU on the small (tile_p, 128) activation in f32.
    patches = patches_ref[0]                                    # (tile_p, 9*Cin) bf16
    z = jnp.dot(patches, stem_w_ref[...],
                preferred_element_type=jnp.float32)             # (tile_p, 128)
    z = z + stem_shift_ref[...]
    z = z * jax.nn.sigmoid(z)                                   # SiLU

    # Head 1x1 conv (lane-dense K=128, BN scale pre-folded into the weights).
    h = jnp.dot(z.astype(jnp.bfloat16), head_w_ref[...],
                preferred_element_type=jnp.float32)             # (tile_p, 1280)

    # Dominant elementwise work (shift + SiLU over tile_p x 1280): bf16 on
    # v6e/v7x (bf16 VPU/EUP -> ~2x throughput), f32 on v5e.
    ew_dtype = jnp.bfloat16 if ew_bf16 else jnp.float32
    h = h.astype(ew_dtype) + head_shift_ref[...].astype(ew_dtype)
    h = h * jax.nn.sigmoid(h)                                   # SiLU

    # Global-avg-pool partial sum as a ones-row MXU matmul (keeps the
    # reduction off the XLU slot).  Rows that only exist because of spatial
    # tile padding get pooling weight 0 -- masking the (1, tile_p) weight row
    # instead of the (tile_p, 1280) activation.
    h_pool = h.astype(jnp.bfloat16)                             # no-op when ew_bf16
    col = t * tile_p + lax.broadcasted_iota(jnp.int32, (1, tile_p), 1)
    pool_w = (col < p_total).astype(jnp.bfloat16)               # (1, tile_p)
    pooled_acc[...] += jnp.dot(pool_w, h_pool,
                               preferred_element_type=jnp.float32)

    @pl.when(t == pl.num_programs(1) - 1)
    def _():
        pooled = pooled_acc[...] * (1.0 / float(p_total))       # global avg pool
        logits = jnp.dot(pooled.astype(jnp.bfloat16), cls_w_ref[...],
                         preferred_element_type=jnp.float32) + cls_b_ref[...]
        out_ref[0] = logits                                     # lane-dense (1,128) store


# ---------------------------------------------------------------------------
# Glue (im2col / parameter packing) in plain JAX
# ---------------------------------------------------------------------------
def _im2col(x_nhwc, k=3, stride=2, pad=1):
    n, h, w, c = x_nhwc.shape
    xp = jnp.pad(x_nhwc, ((0, 0), (pad, pad), (pad, pad), (0, 0)))
    ho = (h + 2 * pad - k) // stride + 1
    wo = (w + 2 * pad - k) // stride + 1
    cols = []
    for ky in range(k):
        for kx in range(k):
            cols.append(xp[:, ky:ky + stride * ho:stride,
                           kx:kx + stride * wo:stride, :])
    patches = jnp.concatenate(cols, axis=-1)                    # (N, Ho, Wo, 9C)
    return patches.reshape(n, ho * wo, k * k * c), (ho, wo)


def init_params(key, num_classes=NUM_CLASSES, in_ch=3):
    ks = jax.random.split(key, 7)
    s = 0.05
    return dict(
        stem_w=s * jax.random.normal(ks[0], (9 * in_ch, STEM_C), jnp.float32),
        stem_scale=jnp.ones((STEM_C,), jnp.float32),            # folded BN
        stem_shift=jnp.zeros((STEM_C,), jnp.float32),
        head_w=s * jax.random.normal(ks[1], (STEM_C, HEAD_C), jnp.float32),
        head_scale=jnp.ones((HEAD_C,), jnp.float32),            # folded BN
        head_shift=jnp.zeros((HEAD_C,), jnp.float32),
        cls_w=s * jax.random.normal(ks[2], (HEAD_C, num_classes), jnp.float32),
        cls_b=jnp.zeros((num_classes,), jnp.float32),
        fc1_w=s * jax.random.normal(ks[3], (2 * num_classes, FC_HIDDEN),
                                    jnp.float32),
        fc1_b=s * jax.random.normal(ks[4], (FC_HIDDEN,), jnp.float32),
        fc2_w=s * jax.random.normal(ks[5], (FC_HIDDEN, num_classes),
                                    jnp.float32),
        fc2_b=s * jax.random.normal(ks[6], (NUM_CLASSES,), jnp.float32),
    )


def pack_params(p):
    """Fold BN scales into weights, pad channel dims to lane-dense widths and
    cast matmul operands to bf16."""
    nc = p["cls_w"].shape[1]
    kin = p["stem_w"].shape[0]
    stem_w_folded = p["stem_w"] * p["stem_scale"][None, :]      # fold BN scale
    stem_w = jnp.zeros((kin, STEM_CP), jnp.float32).at[:, :STEM_C].set(
        stem_w_folded).astype(jnp.bfloat16)
    stem_shift = jnp.zeros((1, STEM_CP), jnp.float32).at[0, :STEM_C].set(
        p["stem_shift"])
    head_w_folded = p["head_w"] * p["head_scale"][None, :]      # fold BN scale
    head_w = jnp.zeros((STEM_CP, HEAD_C), jnp.float32).at[:STEM_C, :].set(
        head_w_folded).astype(jnp.bfloat16)
    cls_w = jnp.zeros((HEAD_C, CLS_P), jnp.float32).at[:, :nc].set(
        p["cls_w"]).astype(jnp.bfloat16)
    cls_b = jnp.zeros((1, CLS_P), jnp.float32).at[0, :nc].set(p["cls_b"])
    return dict(
        stem_w=stem_w, stem_shift=stem_shift,
        head_w=head_w, head_shift=p["head_shift"].reshape(1, HEAD_C),
        cls_w=cls_w, cls_b=cls_b,
        fc1_w=p["fc1_w"], fc1_b=p["fc1_b"].reshape(1, -1),
        fc2_w=p["fc2_w"], fc2_b=p["fc2_b"].reshape(1, -1),
    )


def _fused_backbone(patches, pp, p_total, tile_p, ew_bf16, vmem_bytes):
    """(2N, P_pad, 9C) bf16 patches -> (2N, NUM_CLASSES) logits."""
    n_img = patches.shape[0]
    p_padded = patches.shape[1]
    kin = patches.shape[-1]
    n_tiles = p_padded // tile_p
    kernel = functools.partial(_backbone_kernel, tile_p=tile_p,
                               p_total=p_total, ew_bf16=ew_bf16)
    const = lambda b, t: (0, 0)
    out = pl.pallas_call(
        kernel,
        out_shape=jax.ShapeDtypeStruct((n_img, 1, CLS_P), jnp.float32),
        grid_spec=pltpu.PrefetchScalarGridSpec(
            num_scalar_prefetch=0,
            grid=(n_img, n_tiles),
            in_specs=[
                pl.BlockSpec((1, tile_p, kin), lambda b, t: (b, t, 0)),
                pl.BlockSpec((kin, STEM_CP), const),
                pl.BlockSpec((1, STEM_CP), const),
                pl.BlockSpec((STEM_CP, HEAD_C), const),
                pl.BlockSpec((1, HEAD_C), const),
                pl.BlockSpec((HEAD_C, CLS_P), const),
                pl.BlockSpec((1, CLS_P), const),
            ],
            out_specs=pl.BlockSpec((1, 1, CLS_P), lambda b, t: (b, 0, 0)),
            scratch_shapes=[pltpu.VMEM((1, HEAD_C), jnp.float32)],
        ),
        compiler_params=pltpu.CompilerParams(
            dimension_semantics=("parallel", "arbitrary"),
            vmem_limit_bytes=vmem_bytes),
    )(patches, pp["stem_w"], pp["stem_shift"],
      pp["head_w"], pp["head_shift"], pp["cls_w"], pp["cls_b"])
    return out[:, 0, :NUM_CLASSES]


@jax.jit
def double_image_model_forward(x, y, packed_params):
    pp = packed_params
    n = x.shape[0]
    cfg = _hw_config()

    # Shared-weight backbone on both images at once (single kernel launch,
    # weights DMA'd once, image axis stays >= 2 programs for v7x's 2nd TC).
    imgs = jnp.concatenate([x, y], axis=0)                       # (2N, C, H, W)
    imgs = jnp.transpose(imgs, (0, 2, 3, 1)).astype(jnp.float32)  # NHWC
    patches, (ho, wo) = _im2col(imgs)                            # (2N, P, 9C)
    p_total = ho * wo
    tile_p = min(cfg["tile_cap"], _round_up(p_total, 16))
    p_padded = _round_up(p_total, tile_p)
    if p_padded != p_total:
        patches = jnp.pad(patches, ((0, 0), (0, p_padded - p_total), (0, 0)))
    patches = patches.astype(jnp.bfloat16)

    logits = _fused_backbone(patches, pp, p_total, tile_p,
                             cfg["ew_bf16"], cfg["vmem_bytes"])  # (2N, 7)

    # Fusion MLP: Linear(2*nc, 10) -> ReLU -> Linear(10, nc).  ~300 FLOPs,
    # cheaper as plain XLA than a dedicated pallas_call.
    x1, y1 = logits[:n], logits[n:]
    fusion = jnp.concatenate([x1, y1], axis=1)                   # torch.cat(dim=1)
    h = jnp.maximum(jnp.dot(fusion, pp["fc1_w"]) + pp["fc1_b"], 0.0)
    return jnp.dot(h, pp["fc2_w"]) + pp["fc2_b"]


if __name__ == "__main__":
    key = jax.random.PRNGKey(0)
    kx, ky, kp = jax.random.split(key, 3)

    # Small, NCHW (PyTorch-convention) inputs: batch=2, channels=3, 16x16.
    x = jax.random.normal(kx, (2, 3, 16, 16), jnp.float32)
    y = jax.random.normal(ky, (2, 3, 16, 16), jnp.float32)
    params = init_params(kp)
    packed = pack_params(params)

    out = double_image_model_forward(x, y, packed)
    out = jax.block_until_ready(out)
    assert out.shape == (2, NUM_CLASSES), out.shape
    print("KERNEL_OK")
</pallas_src>

<mosaic_0001>
module attributes {stable_mosaic.version = 11 : i64} {
  func.func @_backbone_kernel(%arg0: i32, %arg1: i32, %arg2: memref<1x64x27xbf16, #tpu.memory_space<vmem>>, %arg3: memref<27x128xbf16, #tpu.memory_space<vmem>>, %arg4: memref<1x128xf32, #tpu.memory_space<vmem>>, %arg5: memref<128x1280xbf16, #tpu.memory_space<vmem>>, %arg6: memref<1x1280xf32, #tpu.memory_space<vmem>>, %arg7: memref<1280x128xbf16, #tpu.memory_space<vmem>>, %arg8: memref<1x128xf32, #tpu.memory_space<vmem>>, %arg9: memref<1x1x128xf32, #tpu.memory_space<vmem>>, %arg10: memref<1x1280xf32, #tpu.memory_space<vmem>>) attributes {dimension_semantics = [#tpu.dimension_semantics<parallel>, #tpu.dimension_semantics<arbitrary>], iteration_bounds = array<i64: 4, 1>, scalar_prefetch = 0 : i64, scratch_operands = 1 : i64, tpu.core_type = #tpu.core_type<tc>, window_params = [{transform_indices = @transform_0, window_bounds = array<i64: 1, 64, 27>}, {pipeline_mode = #tpu.pipeline_mode<synchronous>, transform_indices = @transform_1, window_bounds = array<i64: 27, 128>}, {pipeline_mode = #tpu.pipeline_mode<synchronous>, transform_indices = @transform_2, window_bounds = array<i64: 1, 128>}, {pipeline_mode = #tpu.pipeline_mode<synchronous>, transform_indices = @transform_3, window_bounds = array<i64: 128, 1280>}, {pipeline_mode = #tpu.pipeline_mode<synchronous>, transform_indices = @transform_4, window_bounds = array<i64: 1, 1280>}, {pipeline_mode = #tpu.pipeline_mode<synchronous>, transform_indices = @transform_5, window_bounds = array<i64: 1280, 128>}, {pipeline_mode = #tpu.pipeline_mode<synchronous>, transform_indices = @transform_6, window_bounds = array<i64: 1, 128>}, {transform_indices = @transform_7, window_bounds = array<i64: 1, 1, 128>}]} {
    %c0_i32 = arith.constant 0 : i32
    %0 = arith.cmpi eq, %arg1, %c0_i32 : i32
    %1 = arith.extui %0 : i1 to i32
    %c0_i32_0 = arith.constant 0 : i32
    %2 = arith.cmpi ne, %1, %c0_i32_0 : i32
    scf.if %2 {
      %cst_22 = arith.constant 0.000000e+00 : f32
      %46 = vector.broadcast %cst_22 : f32 to vector<1x1280xf32>
      %c0_23 = arith.constant 0 : index
      %c0_24 = arith.constant 0 : index
      %47 = vector.load %arg10[%c0_23, %c0_24] : memref<1x1280xf32, #tpu.memory_space<vmem>>, vector<1x1280xf32>
      tpu.vector_store %arg10[%c0_23, %c0_24], %46 {strides = array<i32>} : memref<1x1280xf32, #tpu.memory_space<vmem>>, vector<1x1280xf32>,
    } else {
    }
    %c0 = arith.constant 0 : index
    %c0_1 = arith.constant 0 : index
    %c0_2 = arith.constant 0 : index
    %3 = vector.load %arg2[%c0, %c0_1, %c0_2] : memref<1x64x27xbf16, #tpu.memory_space<vmem>>, vector<1x64x27xbf16>
    %4 = vector.shape_cast %3 : vector<1x64x27xbf16> to vector<64x27xbf16>
    %c0_3 = arith.constant 0 : index
    %c0_4 = arith.constant 0 : index
    %5 = vector.load %arg3[%c0_3, %c0_4] : memref<27x128xbf16, #tpu.memory_space<vmem>>, vector<27x128xbf16>
    %cst = arith.constant dense<0.000000e+00> : vector<64x128xf32>
    %6 = tpu.matmul %4, %5, %cst {dimension_numbers = #tpu.dot_dimension_numbers<[1], [0], [0], [1], [0, 0, 1, 1], [], []>} : vector<64x27xbf16>, vector<27x128xbf16>, vector<64x128xf32> -> vector<64x128xf32>
    %c0_5 = arith.constant 0 : index
    %c0_6 = arith.constant 0 : index
    %7 = vector.load %arg4[%c0_5, %c0_6] : memref<1x128xf32, #tpu.memory_space<vmem>>, vector<1x128xf32>
    %8 = vector.broadcast %7 : vector<1x128xf32> to vector<64x128xf32>
    %9 = arith.addf %6, %8 : vector<64x128xf32>
    %10 = arith.negf %9 : vector<64x128xf32>
    %11 = math.exp %10 : vector<64x128xf32>
    %cst_7 = arith.constant 1.000000e+00 : f32
    %12 = vector.broadcast %cst_7 : f32 to vector<64x128xf32>
    %13 = arith.addf %12, %11 : vector<64x128xf32>
    %14 = arith.divf %12, %13 : vector<64x128xf32>
    %15 = arith.mulf %9, %14 : vector<64x128xf32>
    %16 = arith.truncf %15 : vector<64x128xf32> to vector<64x128xbf16>
    %c0_8 = arith.constant 0 : index
    %c0_9 = arith.constant 0 : index
    %17 = vector.load %arg5[%c0_8, %c0_9] : memref<128x1280xbf16, #tpu.memory_space<vmem>>, vector<128x1280xbf16>
    %cst_10 = arith.constant dense<0.000000e+00> : vector<64x1280xf32>
    %18 = tpu.matmul %16, %17, %cst_10 {dimension_numbers = #tpu.dot_dimension_numbers<[1], [0], [0], [1], [0, 0, 1, 1], [], []>} : vector<64x128xbf16>, vector<128x1280xbf16>, vector<64x1280xf32> -> vector<64x1280xf32>
    %19 = arith.truncf %18 : vector<64x1280xf32> to vector<64x1280xbf16>
    %c0_11 = arith.constant 0 : index
    %c0_12 = arith.constant 0 : index
    %20 = vector.load %arg6[%c0_11, %c0_12] : memref<1x1280xf32, #tpu.memory_space<vmem>>, vector<1x1280xf32>
    %21 = arith.truncf %20 : vector<1x1280xf32> to vector<1x1280xbf16>
    %22 = vector.broadcast %21 : vector<1x1280xbf16> to vector<64x1280xbf16>
    %23 = arith.addf %19, %22 : vector<64x1280xbf16>
    %24 = arith.negf %23 : vector<64x1280xbf16>
    %25 = math.exp %24 : vector<64x1280xbf16>
    %cst_13 = arith.constant 1.000000e+00 : bf16
    %26 = vector.broadcast %cst_13 : bf16 to vector<64x1280xbf16>
    %27 = arith.addf %26, %25 : vector<64x1280xbf16>
    %28 = arith.divf %26, %27 : vector<64x1280xbf16>
    %29 = arith.mulf %23, %28 : vector<64x1280xbf16>
    %c64_i32 = arith.constant 64 : i32
    %30 = arith.muli %arg1, %c64_i32 : i32
    %31 = tpu.iota {dimensions = array<i32: 1>} : vector<1x64xi32>
    %32 = vector.broadcast %30 : i32 to vector<1x64xi32>
    %33 = arith.addi %32, %31 : vector<1x64xi32>
    %c64_i32_14 = arith.constant 64 : i32
    %34 = vector.broadcast %c64_i32_14 : i32 to vector<1x64xi32>
    %35 = arith.cmpi slt, %33, %34 : vector<1x64xi32>
    %36 = arith.extui %35 : vector<1x64xi1> to vector<1x64xi32>
    %37 = arith.sitofp %36 : vector<1x64xi32> to vector<1x64xf32>
    %38 = arith.truncf %37 : vector<1x64xf32> to vector<1x64xbf16>
    %c0_15 = arith.constant 0 : index
    %c0_16 = arith.constant 0 : index
    %39 = vector.load %arg10[%c0_15, %c0_16] : memref<1x1280xf32, #tpu.memory_space<vmem>>, vector<1x1280xf32>
    %cst_17 = arith.constant dense<0.000000e+00> : vector<1x1280xf32>
    %40 = tpu.matmul %38, %29, %cst_17 {dimension_numbers = #tpu.dot_dimension_numbers<[1], [0], [0], [1], [0, 0, 1, 1], [], []>} : vector<1x64xbf16>, vector<64x1280xbf16>, vector<1x1280xf32> -> vector<1x1280xf32>
    %41 = arith.addf %39, %40 : vector<1x1280xf32>
    %c0_18 = arith.constant 0 : index
    %c0_19 = arith.constant 0 : index
    %42 = vector.load %arg10[%c0_18, %c0_19] : memref<1x1280xf32, #tpu.memory_space<vmem>>, vector<1x1280xf32>
    tpu.vector_store %arg10[%c0_18, %c0_19], %41 {strides = array<i32>} : memref<1x1280xf32, #tpu.memory_space<vmem>>, vector<1x1280xf32>,
    %c0_i32_20 = arith.constant 0 : i32
    %43 = arith.cmpi eq, %arg1, %c0_i32_20 : i32
    %44 = arith.extui %43 : i1 to i32
    %c0_i32_21 = arith.constant 0 : i32
    %45 = arith.cmpi ne, %44, %c0_i32_21 : i32
    scf.if %45 {
      %c0_22 = arith.constant 0 : index
      %c0_23 = arith.constant 0 : index
      %46 = vector.load %arg10[%c0_22, %c0_23] : memref<1x1280xf32, #tpu.memory_space<vmem>>, vector<1x1280xf32>
      %cst_24 = arith.constant 1.562500e-02 : f32
      %47 = vector.broadcast %cst_24 : f32 to vector<1x1280xf32>
      %48 = arith.mulf %46, %47 : vector<1x1280xf32>
      %49 = arith.truncf %48 : vector<1x1280xf32> to vector<1x1280xbf16>
      %c0_25 = arith.constant 0 : index
      %c0_26 = arith.constant 0 : index
      %50 = vector.load %arg7[%c0_25, %c0_26] : memref<1280x128xbf16, #tpu.memory_space<vmem>>, vector<1280x128xbf16>
      %cst_27 = arith.constant dense<0.000000e+00> : vector<1x128xf32>
      %51 = tpu.matmul %49, %50, %cst_27 {dimension_numbers = #tpu.dot_dimension_numbers<[1], [0], [0], [1], [0, 0, 1, 1], [], []>} : vector<1x1280xbf16>, vector<1280x128xbf16>, vector<1x128xf32> -> vector<1x128xf32>
      %c0_28 = arith.constant 0 : index
      %c0_29 = arith.constant 0 : index
      %52 = vector.load %arg8[%c0_28, %c0_29] : memref<1x128xf32, #tpu.memory_space<vmem>>, vector<1x128xf32>
      %53 = arith.addf %51, %52 : vector<1x128xf32>
      %c0_30 = arith.constant 0 : index
      %c0_31 = arith.constant 0 : index
      %c0_32 = arith.constant 0 : index
      %54 = vector.load %arg9[%c0_30, %c0_31, %c0_32] : memref<1x1x128xf32, #tpu.memory_space<vmem>>, vector<1x1x128xf32>
      %55 = vector.shape_cast %54 : vector<1x1x128xf32> to vector<1x128xf32>
      %56 = vector.shape_cast %53 : vector<1x128xf32> to vector<1x1x128xf32>
      tpu.vector_store %arg9[%c0_30, %c0_31, %c0_32], %56 {strides = array<i32>} : memref<1x1x128xf32, #tpu.memory_space<vmem>>, vector<1x1x128xf32>,
    } else {
    }
    return
  }
  func.func @transform_0(%arg0: i32, %arg1: i32) -> (i32, i32, i32) {
    %c0_i32 = arith.constant 0 : i32
    %c0_i32_0 = arith.constant 0 : i32
    return %arg0, %arg1, %c0_i32 : i32, i32, i32
  }
  func.func @transform_1(%arg0: i32, %arg1: i32) -> (i32, i32) {
    %c0_i32 = arith.constant 0 : i32
    %c0_i32_0 = arith.constant 0 : i32
    %c0_i32_1 = arith.constant 0 : i32
    return %c0_i32, %c0_i32_0 : i32, i32
  }
  func.func @transform_2(%arg0: i32, %arg1: i32) -> (i32, i32) {
    %c0_i32 = arith.constant 0 : i32
    %c0_i32_0 = arith.constant 0 : i32
    %c0_i32_1 = arith.constant 0 : i32
    return %c0_i32, %c0_i32_0 : i32, i32
  }
  func.func @transform_3(%arg0: i32, %arg1: i32) -> (i32, i32) {
    %c0_i32 = arith.constant 0 : i32
    %c0_i32_0 = arith.constant 0 : i32
    %c0_i32_1 = arith.constant 0 : i32
    return %c0_i32, %c0_i32_0 : i32, i32
  }
  func.func @transform_4(%arg0: i32, %arg1: i32) -> (i32, i32) {
    %c0_i32 = arith.constant 0 : i32
    %c0_i32_0 = arith.constant 0 : i32
    %c0_i32_1 = arith.constant 0 : i32
    return %c0_i32, %c0_i32_0 : i32, i32
  }
  func.func @transform_5(%arg0: i32, %arg1: i32) -> (i32, i32) {
    %c0_i32 = arith.constant 0 : i32
    %c0_i32_0 = arith.constant 0 : i32
    %c0_i32_1 = arith.constant 0 : i32
    return %c0_i32, %c0_i32_0 : i32, i32
  }
  func.func @transform_6(%arg0: i32, %arg1: i32) -> (i32, i32) {
    %c0_i32 = arith.constant 0 : i32
    %c0_i32_0 = arith.constant 0 : i32
    %c0_i32_1 = arith.constant 0 : i32
    return %c0_i32, %c0_i32_0 : i32, i32
  }
  func.func @transform_7(%arg0: i32, %arg1: i32) -> (i32, i32, i32) {
    %c0_i32 = arith.constant 0 : i32
    %c0_i32_0 = arith.constant 0 : i32
    %c0_i32_1 = arith.constant 0 : i32
    return %arg0, %c0_i32, %c0_i32_0 : i32, i32, i32
  }
}

</mosaic_0001>

<llo_original>
// kernel: double_image_model_forward.1
$region0: #{double_image_model_forward.1}
  #allocation0 [shape = 'u32[]', space=smem, size = 0x4, offset = 0x4, fixed_abs, tag = 'smem constant byte address 0x4 - core index']
  #allocation1 [shape = 'u32[144,128]{1,0:T(1,128)}', space=vmem, size = 0x12000, scoped, tag = 'internal scratch']
  #allocation2 [shape = 'f32[1,1280]{1,0:T(1,128)}', space=vmem, size = 0x1400, scoped, tag = 'scratch operand']
  %s0 = inlined_call_operand.hbm [shape: bf16[4,64,27], index: 0, kind: input, shape index: {}]
  %s1 = inlined_call_operand.hbm [shape: bf16[27,128], index: 1, kind: input, shape index: {}]
  %s2 = inlined_call_operand.hbm [shape: f32[1,128], index: 2, kind: input, shape index: {}]
  %s3 = inlined_call_operand.hbm [shape: bf16[128,1280], index: 3, kind: input, shape index: {}]
  %s4 = inlined_call_operand.hbm [shape: f32[1,1280], index: 4, kind: input, shape index: {}]
  %s5 = inlined_call_operand.hbm [shape: bf16[1280,128], index: 5, kind: input, shape index: {}]
  %s6 = inlined_call_operand.hbm [shape: f32[1,128], index: 6, kind: input, shape index: {}]
  %s7 = inlined_call_operand.hbm [shape: f32[4,1,128], index: 7, kind: output, shape index: {}]
  %s8 = sld [smem:[#allocation0]]
  $region97: #{double_image_model_forward.1} parent=0
    _
  %s10 = ssub.s32 1, %s8
  %s11 = scalar_select 0, %s10, %s8
  $region1: #{double_image_model_forward.1} parent=0
    #allocation3 [shape = 'u8[32768]{0}', space=vmem, size = 0x8000, scoped, tag = 'input window, operand 0']
    #allocation4 [shape = 's32[2]{0}', space=sflag, size = 0x8, scoped, tag = 'scoped memory for double_image_model_forward.1']
    #allocation5 [shape = 's32[2]{0}', space=sflag, size = 0x8, scoped, tag = 'scoped memory for double_image_model_forward.1']
    #allocation6 [shape = 'u8[8192]{0}', space=vmem, size = 0x2000, scoped, tag = 'input window, operand 1, single buffered']
    #allocation7 [shape = 's32[1]{0}', space=sflag, size = 0x4, scoped, tag = 'scoped memory for double_image_model_forward.1']
    #allocation8 [shape = 'u8[512]{0}', space=vmem, size = 0x400, scoped, tag = 'input window, operand 2, single buffered']
    #allocation9 [shape = 'u8[327680]{0}', space=vmem, size = 0x50000, scoped, tag = 'input window, operand 3, single buffered']
    #allocation10 [shape = 's32[1]{0}', space=sflag, size = 0x4, scoped, tag = 'scoped memory for double_image_model_forward.1']
    #allocation11 [shape = 'u8[5120]{0}', space=vmem, size = 0x1400, scoped, tag = 'input window, operand 4, single buffered']
    #allocation12 [shape = 'u8[327680]{0}', space=vmem, size = 0x50000, scoped, tag = 'input window, operand 5, single buffered']
    #allocation13 [shape = 's32[1]{0}', space=sflag, size = 0x4, scoped, tag = 'scoped memory for double_image_model_forward.1']
    #allocation14 [shape = 'u8[512]{0}', space=vmem, size = 0x400, scoped, tag = 'input window, operand 6, single buffered']
    #allocation15 [shape = 'u8[1024]{0}', space=vmem, size = 0x400, scoped, tag = 'output window, operand 0']
    %12 = vsyncpa [#allocation4], 0
    %s13 = scalar_lea.sflag [#allocation4], 1
    %14 = vsyncpa %s13, 0
    %15 = vsyncpa [#allocation7], 0
    %16 = vsyncpa [#allocation10], 0
    %17 = vsyncpa [#allocation13], 0
    %18 = vsyncpa [#allocation5], 0
    %s19 = scalar_lea.sflag [#allocation5], 1
    %20 = vsyncpa %s19, 0
    loop: start=0, step=1, limit=6
    $region2: #{double_image_model_forward.1} parent=1 // loop_pre_header
      _
    $region3: #{double_image_model_forward.1} parent=1 // loop_header
      %s22 = sphi 0, %s26
      %p23 = scmp.ge.s32.totalorder %s22, 6
      %s29 = sphi 0, %s41
      %s30 = sphi 0, %s37
      %s31 = sphi 0, %s29
      %s32 = sphi 0, %s30
      %s33 = sphi 0, %s31
      %s34 = sphi 0, %s32
      %s46 = sphi 0, %s48
      %s49 = sphi 0, %s46
      %s50 = sphi 0, %s49
      %s66 = sphi 0, %s50
      %s70 = sphi 0, %s70
      %s72 = sphi 0, %s70
      %s73 = sphi 0, %s72
      %s87 = sphi 0, %s73
      %s91 = sphi 0, %s91
      %s93 = sphi 0, %s91
      %s94 = sphi 0, %s93
      %s108 = sphi 0, %s94
      %s112 = sphi 0, %s112
      %s114 = sphi 0, %s112
      %s115 = sphi 0, %s114
      %s129 = sphi 0, %s115
      %s133 = sphi 0, %s133
      %s135 = sphi 0, %s133
      %s136 = sphi 0, %s135
      %s150 = sphi 0, %s136
      %s154 = sphi 0, %s154
      %s156 = sphi 0, %s154
      %s157 = sphi 0, %s156
      %s171 = sphi 0, %s157
      %s175 = sphi 0, %s175
      %s177 = sphi 0, %s175
      %s178 = sphi 0, %s177
      %s192 = sphi 0, %s178
      %s198 = sphi 0, %s200
      %s201 = sphi 0, %s198
      %s202 = sphi 0, %s201
      %s218 = sphi 0, %s202
    $region4: #{double_image_model_forward.1} parent=1 // loop_header_branch
      %25 = sbr.rel (%p23) target = $region8
    $region5: #{double_image_model_forward.1} parent=1 // loop_body
      %s27 = ssub.s32 %s22, 1
      %s28 = ssub.s32 %s22, 2
      %s35 = sadd.s32 1, %s30
      %p36 = scmp.ge.s32.totalorder %s35, 1
      %s37 = scalar_select %p36, 0, %s35
      %s38 = sadd.s32 1, %s29
      %s39 = scalar_select %p36, %s38, %s29
      %p40 = scmp.ge.s32.totalorder %s39, 4
      %s41 = scalar_select %p40, 0, %s39
      %s42 = ssub.s32 %s29, %s41
      %s43 = ssub.s32 %s30, %s37
      %s44 = sor.u32 %s42, %s43
      %p45 = scmp.eq.s32.totalorder %s44, 0
      %s47 = sadd.s32 %s46, 1
      %s48 = scalar_select %p45, %s46, %s47
      %p51 = pneg %p45
      %p52 = scmp.eq.s32.totalorder %s22, 3
      %p53 = por %p51, %p52
      %p54 = scmp.ne.s32.totalorder %s46, %s49
      %p55 = scmp.eq.s32.totalorder %s22, 0
      %p56 = por %p54, %p55
      %p57 = scmp.ne.s32.totalorder %s46, %s49
      %p58 = scmp.eq.s32.totalorder %s27, 3
      %p59 = por %p57, %p58
      %p60 = scmp.ne.s32.totalorder %s49, %s50
      %p61 = scmp.eq.s32.totalorder %s27, 0
      %p62 = por %p60, %p61
      %p63 = scmp.ne.s32.totalorder %s49, %s50
      %p64 = scmp.eq.s32.totalorder %s28, 3
      %p65 = por %p63, %p64
      %p67 = scmp.ne.s32.totalorder %s50, %s66
      %p68 = scmp.eq.s32.totalorder %s28, 0
      %p69 = por %p67, %p68
      %s71 = sadd.s32 %s70, 1
      %p74 = scmp.eq.s32.totalorder %s22, 3
      %p75 = scmp.ne.s32.totalorder %s70, %s72
      %p76 = scmp.eq.s32.totalorder %s22, 0
      %p77 = por %p75, %p76
      %p78 = scmp.ne.s32.totalorder %s70, %s72
      %p79 = scmp.eq.s32.totalorder %s27, 3
      %p80 = por %p78, %p79
      %p81 = scmp.ne.s32.totalorder %s72, %s73
      %p82 = scmp.eq.s32.totalorder %s27, 0
      %p83 = por %p81, %p82
      %p84 = scmp.ne.s32.totalorder %s72, %s73
      %p85 = scmp.eq.s32.totalorder %s28, 3
      %p86 = por %p84, %p85
      %p88 = scmp.ne.s32.totalorder %s73, %s87
      %p89 = scmp.eq.s32.totalorder %s28, 0
      %p90 = por %p88, %p89
      %s92 = sadd.s32 %s91, 1
      %p95 = scmp.eq.s32.totalorder %s22, 3
      %p96 = scmp.ne.s32.totalorder %s91, %s93
      %p97 = scmp.eq.s32.totalorder %s22, 0
      %p98 = por %p96, %p97
      %p99 = scmp.ne.s32.totalorder %s91, %s93
      %p100 = scmp.eq.s32.totalorder %s27, 3
      %p101 = por %p99, %p100
      %p102 = scmp.ne.s32.totalorder %s93, %s94
      %p103 = scmp.eq.s32.totalorder %s27, 0
      %p104 = por %p102, %p103
      %p105 = scmp.ne.s32.totalorder %s93, %s94
      %p106 = scmp.eq.s32.totalorder %s28, 3
      %p107 = por %p105, %p106
      %p109 = scmp.ne.s32.totalorder %s94, %s108
      %p110 = scmp.eq.s32.totalorder %s28, 0
      %p111 = por %p109, %p110
      %s113 = sadd.s32 %s112, 1
      %p116 = scmp.eq.s32.totalorder %s22, 3
      %p117 = scmp.ne.s32.totalorder %s112, %s114
      %p118 = scmp.eq.s32.totalorder %s22, 0
      %p119 = por %p117, %p118
      %p120 = scmp.ne.s32.totalorder %s112, %s114
      %p121 = scmp.eq.s32.totalorder %s27, 3
      %p122 = por %p120, %p121
      %p123 = scmp.ne.s32.totalorder %s114, %s115
      %p124 = scmp.eq.s32.totalorder %s27, 0
      %p125 = por %p123, %p124
      %p126 = scmp.ne.s32.totalorder %s114, %s115
      %p127 = scmp.eq.s32.totalorder %s28, 3
      %p128 = por %p126, %p127
      %p130 = scmp.ne.s32.totalorder %s115, %s129
      %p131 = scmp.eq.s32.totalorder %s28, 0
      %p132 = por %p130, %p131
      %s134 = sadd.s32 %s133, 1
      %p137 = scmp.eq.s32.totalorder %s22, 3
      %p138 = scmp.ne.s32.totalorder %s133, %s135
      %p139 = scmp.eq.s32.totalorder %s22, 0
      %p140 = por %p138, %p139
      %p141 = scmp.ne.s32.totalorder %s133, %s135
      %p142 = scmp.eq.s32.totalorder %s27, 3
      %p143 = por %p141, %p142
      %p144 = scmp.ne.s32.totalorder %s135, %s136
      %p145 = scmp.eq.s32.totalorder %s27, 0
      %p146 = por %p144, %p145
      %p147 = scmp.ne.s32.totalorder %s135, %s136
      %p148 = scmp.eq.s32.totalorder %s28, 3
      %p149 = por %p147, %p148
      %p151 = scmp.ne.s32.totalorder %s136, %s150
      %p152 = scmp.eq.s32.totalorder %s28, 0
      %p153 = por %p151, %p152
      %s155 = sadd.s32 %s154, 1
      %p158 = scmp.eq.s32.totalorder %s22, 3
      %p159 = scmp.ne.s32.totalorder %s154, %s156
      %p160 = scmp.eq.s32.totalorder %s22, 0
      %p161 = por %p159, %p160
      %p162 = scmp.ne.s32.totalorder %s154, %s156
      %p163 = scmp.eq.s32.totalorder %s27, 3
      %p164 = por %p162, %p163
      %p165 = scmp.ne.s32.totalorder %s156, %s157
      %p166 = scmp.eq.s32.totalorder %s27, 0
      %p167 = por %p165, %p166
      %p168 = scmp.ne.s32.totalorder %s156, %s157
      %p169 = scmp.eq.s32.totalorder %s28, 3
      %p170 = por %p168, %p169
      %p172 = scmp.ne.s32.totalorder %s157, %s171
      %p173 = scmp.eq.s32.totalorder %s28, 0
      %p174 = por %p172, %p173
      %s176 = sadd.s32 %s175, 1
      %p179 = scmp.eq.s32.totalorder %s22, 3
      %p180 = scmp.ne.s32.totalorder %s175, %s177
      %p181 = scmp.eq.s32.totalorder %s22, 0
      %p182 = por %p180, %p181
      %p183 = scmp.ne.s32.totalorder %s175, %s177
      %p184 = scmp.eq.s32.totalorder %s27, 3
      %p185 = por %p183, %p184
      %p186 = scmp.ne.s32.totalorder %s177, %s178
      %p187 = scmp.eq.s32.totalorder %s27, 0
      %p188 = por %p186, %p187
      %p189 = scmp.ne.s32.totalorder %s177, %s178
      %p190 = scmp.eq.s32.totalorder %s28, 3
      %p191 = por %p189, %p190
      %p193 = scmp.ne.s32.totalorder %s178, %s192
      %p194 = scmp.eq.s32.totalorder %s28, 0
      %p195 = por %p193, %p194
      %s196 = ssub.s32 %s29, %s41
      %p197 = scmp.eq.s32.totalorder %s196, 0
      %s199 = sadd.s32 %s198, 1
      %s200 = scalar_select %p197, %s198, %s199
      %p203 = pneg %p197
      %p204 = scmp.eq.s32.totalorder %s22, 3
      %p205 = por %p203, %p204
      %p206 = scmp.ne.s32.totalorder %s198, %s201
      %p207 = scmp.eq.s32.totalorder %s22, 0
      %p208 = por %p206, %p207
      %p209 = scmp.ne.s32.totalorder %s198, %s201
      %p210 = scmp.eq.s32.totalorder %s27, 3
      %p211 = por %p209, %p210
      %p212 = scmp.ne.s32.totalorder %s201, %s202
      %p213 = scmp.eq.s32.totalorder %s27, 0
      %p214 = por %p212, %p213
      %p215 = scmp.ne.s32.totalorder %s201, %s202
      %p216 = scmp.eq.s32.totalorder %s28, 3
      %p217 = por %p215, %p216
      %p219 = scmp.ne.s32.totalorder %s202, %s218
      %p220 = scmp.eq.s32.totalorder %s28, 0
      %p221 = por %p219, %p220
      %p222 = scmp.le.s32.totalorder 1, %s22
      %p223 = scmp.lt.s32.totalorder %s22, 5
      %p224 = pnand %p222, %p223
      %p225 = pneg %p224
      // Predicated region
      $region9: #{double_image_model_forward.1} parent=5 // pred_check
        _
      $region10: #{double_image_model_forward.1} parent=5 // pred_check_branch
        %227 = sbr.rel (%p224) target = $region12
      $region11: #{double_image_model_forward.1} parent=5 // pred_region
        %s228 = ssub.s32 %s22, 1
        // Predicated region
        $region13: #{double_image_model_forward.1} parent=11 // pred_check
          %p229 = pneg %p83
        $region14: #{double_image_model_forward.1} parent=11 // pred_check_branch
          %231 = sbr.rel (%p229) target = $region16
        $region15: #{double_image_model_forward.1} parent=11 // pred_region
          %s233 = ssub.s32 256, 256
          %234 = vsyncadd [#allocation7], %s233
          %s235 = sshll.u32 [#allocation6], 4
          %s236 = int_to_ptr.vmem [resolvable:$true] %s235
          %241 = dma.hbm_to_vmem [thread:$0]  %s1, 256, %s236, [#allocation7], 64, 64, 4
        $region16: #{double_image_model_forward.1} parent=11 // pred_fallthru
          _
        // Predicated region
        $region17: #{double_image_model_forward.1} parent=11 // pred_check
          %p242 = pneg %p104
        $region18: #{double_image_model_forward.1} parent=11 // pred_check_branch
          %244 = sbr.rel (%p242) target = $region20
        $region19: #{double_image_model_forward.1} parent=11 // pred_region
          %s246 = ssub.s32 16, 16
          %247 = vsyncadd [#allocation7], %s246
          %s249 = sshll.u32 [#allocation8], 4
          %s250 = int_to_ptr.vmem [resolvable:$true] %s249
          %252 = dma.hbm_to_vmem [thread:$0]  %s2, 16, %s250, [#allocation7]
        $region20: #{double_image_model_forward.1} parent=11 // pred_fallthru
          _
        // Predicated region
        $region21: #{double_image_model_forward.1} parent=11 // pred_check
          %p253 = pneg %p125
        $region22: #{double_image_model_forward.1} parent=11 // pred_check_branch
          %255 = sbr.rel (%p253) target = $region24
        $region23: #{double_image_model_forward.1} parent=11 // pred_region
          %s257 = ssub.s32 10240, 10240
          %258 = vsyncadd [#allocation10], %s257
          %s259 = sshll.u32 [#allocation9], 4
          %s260 = int_to_ptr.vmem [resolvable:$true] %s259
          %265 = dma.hbm_to_vmem [thread:$0]  %s3, 10240, %s260, [#allocation10], 640, 640, 40
        $region24: #{double_image_model_forward.1} parent=11 // pred_fallthru
          _
        // Predicated region
        $region25: #{double_image_model_forward.1} parent=11 // pred_check
          %p266 = pneg %p146
        $region26: #{double_image_model_forward.1} parent=11 // pred_check_branch
          %268 = sbr.rel (%p266) target = $region28
        $region27: #{double_image_model_forward.1} parent=11 // pred_region
          %s270 = ssub.s32 160, 160
          %271 = vsyncadd [#allocation10], %s270
          %s273 = sshll.u32 [#allocation11], 4
          %s274 = int_to_ptr.vmem [resolvable:$true] %s273
          %276 = dma.hbm_to_vmem [thread:$0]  %s4, 160, %s274, [#allocation10]
        $region28: #{double_image_model_forward.1} parent=11 // pred_fallthru
          _
        // Predicated region
        $region29: #{double_image_model_forward.1} parent=11 // pred_check
          %p277 = pneg %p167
        $region30: #{double_image_model_forward.1} parent=11 // pred_check_branch
          %279 = sbr.rel (%p277) target = $region32
        $region31: #{double_image_model_forward.1} parent=11 // pred_region
          %s281 = ssub.s32 10240, 10240
          %282 = vsyncadd [#allocation13], %s281
          %s283 = sshll.u32 [#allocation12], 4
          %s284 = int_to_ptr.vmem [resolvable:$true] %s283
          %289 = dma.hbm_to_vmem [thread:$0]  %s5, 10240, %s284, [#allocation13], 64, 64, 4
        $region32: #{double_image_model_forward.1} parent=11 // pred_fallthru
          _
        // Predicated region
        $region33: #{double_image_model_forward.1} parent=11 // pred_check
          %p290 = pneg %p188
        $region34: #{double_image_model_forward.1} parent=11 // pred_check_branch
          %292 = sbr.rel (%p290) target = $region36
        $region35: #{double_image_model_forward.1} parent=11 // pred_region
          %s294 = ssub.s32 16, 16
          %295 = vsyncadd [#allocation13], %s294
          %s297 = sshll.u32 [#allocation14], 4
          %s298 = int_to_ptr.vmem [resolvable:$true] %s297
          %300 = dma.hbm_to_vmem [thread:$0]  %s6, 16, %s298, [#allocation13]
        $region36: #{double_image_model_forward.1} parent=11 // pred_fallthru
          _
      $region12: #{double_image_model_forward.1} parent=5 // pred_fallthru
        _
      %p301 = scmp.lt.s32.totalorder %s22, 4
      // Predicated region
      $region37: #{double_image_model_forward.1} parent=5 // pred_check
        %p302 = pneg %p301
      $region38: #{double_image_model_forward.1} parent=5 // pred_check_branch
        %304 = sbr.rel (%p302) target = $region40
      $region39: #{double_image_model_forward.1} parent=5 // pred_region
        // Predicated region
        $region41: #{double_image_model_forward.1} parent=39 // pred_check
          %p305 = pneg %p56
        $region42: #{double_image_model_forward.1} parent=39 // pred_check_branch
          %307 = sbr.rel (%p305) target = $region44
        $region43: #{double_image_model_forward.1} parent=39 // pred_region
          %s308 = sand.u32 %s46, 1
          %s309 = scalar_lea.sflag [#allocation4], %s308
          %s310 = sand.u32 %s46, 1
          %s311 = smul.addr %s310, 32
          %s312 = scalar_lea.vmem [#allocation3], %s311
          %s313 = smul.u32 8, %s30
          %s315 = ssub.s32 512, 512
          %316 = vsyncadd %s309, %s315
          %s317 = smul.addr %s29, 8
          %s318 = sadd.s32 %s313, %s317
          %s319 = smul.addr %s318, 64
          %s320 = scalar_lea.hbm %s0, %s319
          %s321 = sshll.u32 %s312, 4
          %s322 = int_to_ptr.vmem [resolvable:$true] %s321
          %327 = dma.hbm_to_vmem [thread:$0]  %s320, 512, %s322, %s309, 64, 64, 4
        $region44: #{double_image_model_forward.1} parent=39 // pred_fallthru
          _
      $region40: #{double_image_model_forward.1} parent=5 // pred_fallthru
        _
      %p328 = scmp.le.s32.totalorder 1, %s22
      %p329 = scmp.lt.s32.totalorder %s22, 5
      %p330 = pnand %p328, %p329
      %p331 = pneg %p330
      // Predicated region
      $region45: #{double_image_model_forward.1} parent=5 // pred_check
        _
      $region46: #{double_image_model_forward.1} parent=5 // pred_check_branch
        %333 = sbr.rel (%p330) target = $region48
      $region47: #{double_image_model_forward.1} parent=5 // pred_region
        %s334 = ssub.s32 %s22, 1
        %s335 = sand.u32 %s49, 1
        %s336 = scalar_lea.sflag [#allocation4], %s335
        %s337 = sand.u32 %s49, 1
        %s338 = smul.addr %s337, 32
        %s339 = scalar_lea.vmem [#allocation3], %s338
        // Predicated region
        $region49: #{double_image_model_forward.1} parent=47 // pred_check
          %p340 = pneg %p62
        $region50: #{double_image_model_forward.1} parent=47 // pred_check_branch
          %342 = sbr.rel (%p340) target = $region52
        $region51: #{double_image_model_forward.1} parent=47 // pred_region
          %343 = dma.done %s336, 512
        $region52: #{double_image_model_forward.1} parent=47 // pred_fallthru
          _
        // Predicated region
        $region53: #{double_image_model_forward.1} parent=47 // pred_check
          %p344 = pneg %p83
        $region54: #{double_image_model_forward.1} parent=47 // pred_check_branch
          %346 = sbr.rel (%p344) target = $region56
        $region55: #{double_image_model_forward.1} parent=47 // pred_region
          %347 = dma.done [#allocation7], 256
        $region56: #{double_image_model_forward.1} parent=47 // pred_fallthru
          _
        // Predicated region
        $region57: #{double_image_model_forward.1} parent=47 // pred_check
          %p348 = pneg %p104
        $region58: #{double_image_model_forward.1} parent=47 // pred_check_branch
          %350 = sbr.rel (%p348) target = $region60
        $region59: #{double_image_model_forward.1} parent=47 // pred_region
          %351 = dma.done [#allocation7], 16
        $region60: #{double_image_model_forward.1} parent=47 // pred_fallthru
          _
        // Predicated region
        $region61: #{double_image_model_forward.1} parent=47 // pred_check
          %p352 = pneg %p125
        $region62: #{double_image_model_forward.1} parent=47 // pred_check_branch
          %354 = sbr.rel (%p352) target = $region64
        $region63: #{double_image_model_forward.1} parent=47 // pred_region
          %355 = dma.done [#allocation10], 10240
        $region64: #{double_image_model_forward.1} parent=47 // pred_fallthru
          _
        // Predicated region
        $region65: #{double_image_model_forward.1} parent=47 // pred_check
          %p356 = pneg %p146
        $region66: #{double_image_model_forward.1} parent=47 // pred_check_branch
          %358 = sbr.rel (%p356) target = $region68
        $region67: #{double_image_model_forward.1} parent=47 // pred_region
          %359 = dma.done [#allocation10], 160
        $region68: #{double_image_model_forward.1} parent=47 // pred_fallthru
          _
        // Predicated region
        $region69: #{double_image_model_forward.1} parent=47 // pred_check
          %p360 = pneg %p167
        $region70: #{double_image_model_forward.1} parent=47 // pred_check_branch
          %362 = sbr.rel (%p360) target = $region72
        $region71: #{double_image_model_forward.1} parent=47 // pred_region
          %363 = dma.done [#allocation13], 10240
        $region72: #{double_image_model_forward.1} parent=47 // pred_fallthru
          _
        // Predicated region
        $region73: #{double_image_model_forward.1} parent=47 // pred_check
          %p364 = pneg %p188
        $region74: #{double_image_model_forward.1} parent=47 // pred_check_branch
          %366 = sbr.rel (%p364) target = $region76
        $region75: #{double_image_model_forward.1} parent=47 // pred_region
          %367 = dma.done [#allocation13], 16
        $region76: #{double_image_model_forward.1} parent=47 // pred_fallthru
          _
        %s368 = sand.u32 %s49, 1
        %s369 = scalar_lea.sflag [#allocation4], %s368
        %s370 = sand.u32 %s49, 1
        %s371 = smul.addr %s370, 32
        %s372 = scalar_lea.vmem [#allocation3], %s371
        %p373 = pneg %p62
        %p374 = pneg %p59
        %p375 = pneg %p83
        %p376 = pneg %p80
        %p377 = pneg %p104
        %p378 = pneg %p101
        %p379 = pneg %p125
        %p380 = pneg %p122
        %p381 = pneg %p146
        %p382 = pneg %p143
        %p383 = pneg %p167
        %p384 = pneg %p164
        %p385 = pneg %p188
        %p386 = pneg %p185
        %p387 = pneg %p214
        %p388 = pneg %p211
        %s389 = sand.u32 %s201, 1
        %s390 = scalar_lea.sflag [#allocation5], %s389
        %s391 = sand.u32 %s201, 1
        %s392 = scalar_lea.vmem [#allocation15], %s391
        %s393 = smul.u32 8, %s32
        %p396 = scmp.eq.s32.totalorder %s32, 0
        // Predicated region
        $region77: #{double_image_model_forward.1} parent=47 // pred_check
          %p397 = pneg %p396
        $region78: #{double_image_model_forward.1} parent=47 // pred_check_branch
          %399 = sbr.rel (%p397) target = $region80
        $region79: #{double_image_model_forward.1} parent=47 // pred_region
          %400 = vst [vmem:[#allocation2] sm:$0xff] 0.0
          %v401 = vlaneseq
          %vm402 = vcmp.ge.s32.totalorder %v401, 0
          %vm403 = vcmp.lt.s32.totalorder %v401, 256
          %vm404 = vmand %vm402, %vm403
          %405 = vst.msk [vmem:[#allocation2 + $0x8] sm:$0x3] %vm404, 0.0
        $region80: #{double_image_model_forward.1} parent=47 // pred_fallthru
          _
        %v406 = vld [vmem:[%s339] sm:$0xf]
        %v407 = vld [vmem:[%s339 + $0x4] sm:$0xf]
        %v408 = vld [vmem:[%s339 + $0x8] sm:$0xf]
        %v409 = vld [vmem:[%s339 + $0xc] sm:$0xf]
        %v410 = vld [vmem:[%s339 + $0x10] sm:$0xf]
        %v411 = vld [vmem:[%s339 + $0x14] sm:$0xf]
        %v412 = vld [vmem:[%s339 + $0x18] sm:$0xf]
        %v413 = vld [vmem:[%s339 + $0x1c] sm:$0xf]
        %v414 = vld [vmem:[#allocation6] sm:$0xf]
        %v415 = vld [vmem:[#allocation6 + $0x4] sm:$0xf]
        %v416 = vld [vmem:[#allocation6 + $0x8] sm:$0xf]
        %v417 = vld [vmem:[#allocation6 + $0xc] sm:$0x3]
        %v418 = vld [vmem:[#allocation8] sm:$0x1]
        %v420 = vlaneseq
        %v421 = vshrl.u32 %v420, 7
        %v422 = vsub.s32 0, %v421
        %v423 = vrot.slane %v418, %v422
        %v433 = vunpack.c.l.b16 %v406
        %v434 = vunpack.c.l.b16 %v407
        %v435 = vunpack.c.l.b16 %v408
        %v436 = vunpack.c.l.b16 %v409
        %v437 = vunpack.c.l.b16 %v410
        %v438 = vunpack.c.l.b16 %v411
        %v439 = vunpack.c.l.b16 %v412
        %v440 = vunpack.c.l.b16 %v413
        %v441 = vpack.c.b16 %v434, %v433
        %v442 = vpack.c.b16 %v436, %v435
        %v443 = vpack.c.b16 %v438, %v437
        %v444 = vpack.c.b16 %v440, %v439
        %v449 = vunpack.c.l.b16 %v414
        %v450 = vunpack.c.l.b16 %v415
        %v451 = vunpack.c.l.b16 %v416
        %v452 = vunpack.c.l.b16 %v417
        %v453 = vpack.c.b16 %v450, %v449
        %v454 = vpack.c.b16 %v452, %v451
        %vm456 = vcmask 220160
        %v458 = vsel %vm456, %v441, 0
        %v461 = vsel %vm456, %v442, 0
        %v464 = vsel %vm456, %v443, 0
        %v467 = vsel %vm456, %v444, 0
        %vm469 = vcmask 1044480
        %vm470 = vcmask 1045504
        %v471 = vsel %vm469, 4294967295, 65535
        %v472 = vsel %vm470, %v471, 0
        %v474 = vand.u32 %v454, %v472
        %476 = vmatprep.subr.bf16.mxu0 0
        %477 = vmatpush1.bf16.msra.mxu0 %v453
        %478 = vmatprep.subr.bf16.mxu0 0
        %479 = vmatpush1.bf16.msra.mxu0 %v474
        %480 = vmatprep.subr.bf16.mxu0 0
        %481 = vmatpush1.bf16.msra.mxu0 0
        %482 = vmatprep.subr.bf16.mxu0 0
        %483 = vmatpush1.bf16.msra.mxu0 0
        %484 = vmatprep.subr.bf16.mxu0 0
        %485 = vmatpush1.bf16.msra.mxu0 0
        %486 = vmatprep.subr.bf16.mxu0 0
        %487 = vmatpush1.bf16.msra.mxu0 0
        %488 = vmatprep.subr.bf16.mxu0 0
        %489 = vmatpush1.bf16.msra.mxu0 0
        %490 = vmatprep.subr.bf16.mxu0 0
        %491 = vmatpush1.bf16.msra.mxu0 0
        %492 = vmatprep.subr.bf16.mxu0 0
        %493 = vmatpush1.bf16.msra.mxu0 0
        %494 = vmatprep.subr.bf16.mxu0 0
        %495 = vmatpush1.bf16.msra.mxu0 0
        %496 = vmatprep.subr.bf16.mxu0 0
        %497 = vmatpush1.bf16.msra.mxu0 0
        %498 = vmatprep.subr.bf16.mxu0 0
        %499 = vmatpush1.bf16.msra.mxu0 0
        %500 = vmatprep.subr.bf16.mxu0 0
        %501 = vmatpush1.bf16.msra.mxu0 0
        %502 = vmatprep.subr.bf16.mxu0 0
        %503 = vmatpush1.bf16.msra.mxu0 0
        %504 = vmatprep.subr.bf16.mxu0 0
        %505 = vmatpush1.bf16.msra.mxu0 0
        %506 = vmatprep.subr.bf16.mxu0 0
        %507 = vmatpush1.bf16.msra.mxu0 0
        %508 = vmatprep.mubr.bf16.mxu0 0
        %509 = vmatmul.mubr.bf16.gmra.mrb[0].mxu0 %v458
        %v510 = vpop.f32.mrb[0].mxu0
        %v511 = vadd.f32 %v423, %v510
        %v512 = vpop.f32.mrb[0].mxu0
        %v513 = vpop.f32.mrb[0].mxu0
        %v514 = vadd.f32 %v423, %v513
        %v515 = vpop.f32.mrb[0].mxu0
        %516 = vmatprep.mubr.bf16.mxu0 0
        %517 = vmatmul.mubr.bf16.gmra.mrb[0].mxu0 %v461
        %v518 = vpop.f32.mrb[0].mxu0
        %v519 = vadd.f32 %v423, %v518
        %v520 = vpop.f32.mrb[0].mxu0
        %v521 = vpop.f32.mrb[0].mxu0
        %v522 = vadd.f32 %v423, %v521
        %v523 = vpop.f32.mrb[0].mxu0
        %524 = vmatprep.mubr.bf16.mxu0 0
        %525 = vmatmul.mubr.bf16.gmra.mrb[0].mxu0 %v464
        %v526 = vpop.f32.mrb[0].mxu0
        %v527 = vadd.f32 %v423, %v526
        %v528 = vpop.f32.mrb[0].mxu0
        %v529 = vpop.f32.mrb[0].mxu0
        %v530 = vadd.f32 %v423, %v529
        %v531 = vpop.f32.mrb[0].mxu0
        %532 = vmatprep.mubr.bf16.mxu0 0
        %533 = vmatmul.mubr.bf16.gmra.mrb[0].mxu0 %v467
        %v534 = vpop.f32.mrb[0].mxu0
        %v535 = vadd.f32 %v423, %v534
        %v536 = vpop.f32.mrb[0].mxu0
        %v537 = vpop.f32.mrb[0].mxu0
        %v538 = vadd.f32 %v423, %v537
        %v539 = vpop.f32.mrb[0].mxu0
        %540 = vdwg.mxu0
        %v541 = vxor.u32 %v511, 2147483648
        %v542 = vxor.u32 %v514, 2147483648
        %v543 = vxor.u32 %v519, 2147483648
        %v544 = vxor.u32 %v522, 2147483648
        %v545 = vxor.u32 %v527, 2147483648
        %v546 = vxor.u32 %v530, 2147483648
        %v547 = vxor.u32 %v535, 2147483648
        %v548 = vxor.u32 %v538, 2147483648
        %v549 = vmul.f32 %v541, 1.442695
        %v550 = vpow.pop %v549
        %v551 = vmul.f32 %v542, 1.442695
        %v552 = vpow.pop %v551
        %v553 = vmul.f32 %v543, 1.442695
        %v554 = vpow.pop %v553
        %v555 = vmul.f32 %v544, 1.442695
        %v556 = vpow.pop %v555
        %v557 = vmul.f32 %v545, 1.442695
        %v558 = vpow.pop %v557
        %v559 = vmul.f32 %v546, 1.442695
        %v560 = vpow.pop %v559
        %v561 = vmul.f32 %v547, 1.442695
        %v562 = vpow.pop %v561
        %v563 = vmul.f32 %v548, 1.442695
        %v564 = vpow.pop %v563
        %v565 = vadd.f32 %v550, 1.0
        %v566 = vadd.f32 %v552, 1.0
        %v567 = vadd.f32 %v554, 1.0
        %v568 = vadd.f32 %v556, 1.0
        %v569 = vadd.f32 %v558, 1.0
        %v570 = vadd.f32 %v560, 1.0
        %v571 = vadd.f32 %v562, 1.0
        %v572 = vadd.f32 %v564, 1.0
        %v573 = vrcp.pop %v565
        %v574 = vmul.f32 1.0, %v573
        %v575 = vrcp.pop %v566
        %v576 = vmul.f32 1.0, %v575
        %v577 = vrcp.pop %v567
        %v578 = vmul.f32 1.0, %v577
        %v579 = vrcp.pop %v568
        %v580 = vmul.f32 1.0, %v579
        %v581 = vrcp.pop %v569
        %v582 = vmul.f32 1.0, %v581
        %v583 = vrcp.pop %v570
        %v584 = vmul.f32 1.0, %v583
        %v585 = vrcp.pop %v571
        %v586 = vmul.f32 1.0, %v585
        %v587 = vrcp.pop %v572
        %v588 = vmul.f32 1.0, %v587
        %v589 = vmul.f32 %v511, %v574
        %v590 = vmul.f32 %v514, %v576
        %v591 = vmul.f32 %v519, %v578
        %v592 = vmul.f32 %v522, %v580
        %v593 = vmul.f32 %v527, %v582
        %v594 = vmul.f32 %v530, %v584
        %v595 = vmul.f32 %v535, %v586
        %v596 = vmul.f32 %v538, %v588
        %v597 = vpack.c.bf16 %v590, %v589
        %v598 = vpack.c.bf16 %v592, %v591
        %v599 = vpack.c.bf16 %v594, %v593
        %v600 = vpack.c.bf16 %v596, %v595
        %v601 = vld [vmem:[#allocation9] sm:$0xff]
        %v602 = vld [vmem:[#allocation9 + $0x8] sm:$0xff]
        %v603 = vld [vmem:[#allocation9 + $0x10] sm:$0xff]
        %v604 = vld [vmem:[#allocation9 + $0x18] sm:$0xff]
        %v605 = vld [vmem:[#allocation9 + $0x20] sm:$0xff]
        %v606 = vld [vmem:[#allocation9 + $0x28] sm:$0xff]
        %v607 = vld [vmem:[#allocation9 + $0x30] sm:$0xff]
        %v608 = vld [vmem:[#allocation9 + $0x38] sm:$0xff]
        %v609 = vld [vmem:[#allocation9 + $0x40] sm:$0xff]
        %v610 = vld [vmem:[#allocation9 + $0x48] sm:$0xff]
        %v611 = vld [vmem:[#allocation9 + $0x50] sm:$0xff]
        %v612 = vld [vmem:[#allocation9 + $0x58] sm:$0xff]
        %v613 = vld [vmem:[#allocation9 + $0x60] sm:$0xff]
        %v614 = vld [vmem:[#allocation9 + $0x68] sm:$0xff]
        %v615 = vld [vmem:[#allocation9 + $0x70] sm:$0xff]
        %v616 = vld [vmem:[#allocation9 + $0x78] sm:$0xff]
        %v617 = vld [vmem:[#allocation9 + $0x80] sm:$0xff]
        %v618 = vld [vmem:[#allocation9 + $0x88] sm:$0xff]
        %v619 = vld [vmem:[#allocation9 + $0x90] sm:$0xff]
        %v620 = vld [vmem:[#allocation9 + $0x98] sm:$0xff]
        %v621 = vld [vmem:[#allocation9 + $0xa0] sm:$0xff]
        %v622 = vld [vmem:[#allocation9 + $0xa8] sm:$0xff]
        %v623 = vld [vmem:[#allocation9 + $0xb0] sm:$0xff]
        %v624 = vld [vmem:[#allocation9 + $0xb8] sm:$0xff]
        %v625 = vld [vmem:[#allocation9 + $0xc0] sm:$0xff]
        %v626 = vld [vmem:[#allocation9 + $0xc8] sm:$0xff]
        %v627 = vld [vmem:[#allocation9 + $0xd0] sm:$0xff]
        %v628 = vld [vmem:[#allocation9 + $0xd8] sm:$0xff]
        %v629 = vld [vmem:[#allocation9 + $0xe0] sm:$0xff]
        %v630 = vld [vmem:[#allocation9 + $0xe8] sm:$0xff]
        %v631 = vld [vmem:[#allocation9 + $0xf0] sm:$0xff]
        %v632 = vld [vmem:[#allocation9 + $0xf8] sm:$0xff]
        %v633 = vld [vmem:[#allocation9 + $0x100] sm:$0xff]
        %v634 = vld [vmem:[#allocation9 + $0x108] sm:$0xff]
        %v635 = vld [vmem:[#allocation9 + $0x110] sm:$0xff]
        %v636 = vld [vmem:[#allocation9 + $0x118] sm:$0xff]
        %v637 = vld [vmem:[#allocation9 + $0x120] sm:$0xff]
        %v638 = vld [vmem:[#allocation9 + $0x128] sm:$0xff]
        %v639 = vld [vmem:[#allocation9 + $0x130] sm:$0xff]
        %v640 = vld [vmem:[#allocation9 + $0x138] sm:$0xff]
        %v641 = vld [vmem:[#allocation9 + $0x140] sm:$0xff]
        %v642 = vld [vmem:[#allocation9 + $0x148] sm:$0xff]
        %v643 = vld [vmem:[#allocation9 + $0x150] sm:$0xff]
        %v644 = vld [vmem:[#allocation9 + $0x158] sm:$0xff]
        %v645 = vld [vmem:[#allocation9 + $0x160] sm:$0xff]
        %v646 = vld [vmem:[#allocation9 + $0x168] sm:$0xff]
        %v647 = vld [vmem:[#allocation9 + $0x170] sm:$0xff]
        %v648 = vld [vmem:[#allocation9 + $0x178] sm:$0xff]
        %v649 = vld [vmem:[#allocation9 + $0x180] sm:$0xff]
        %v650 = vld [vmem:[#allocation9 + $0x188] sm:$0xff]
        %v651 = vld [vmem:[#allocation9 + $0x190] sm:$0xff]
        %v652 = vld [vmem:[#allocation9 + $0x198] sm:$0xff]
        %v653 = vld [vmem:[#allocation9 + $0x1a0] sm:$0xff]
        %v654 = vld [vmem:[#allocation9 + $0x1a8] sm:$0xff]
        %v655 = vld [vmem:[#allocation9 + $0x1b0] sm:$0xff]
        %v656 = vld [vmem:[#allocation9 + $0x1b8] sm:$0xff]
        %v657 = vld [vmem:[#allocation9 + $0x1c0] sm:$0xff]
        %v658 = vld [vmem:[#allocation9 + $0x1c8] sm:$0xff]
        %v659 = vld [vmem:[#allocation9 + $0x1d0] sm:$0xff]
        %v660 = vld [vmem:[#allocation9 + $0x1d8] sm:$0xff]
        %v661 = vld [vmem:[#allocation9 + $0x1e0] sm:$0xff]
        %v662 = vld [vmem:[#allocation9 + $0x1e8] sm:$0xff]
        %v663 = vld [vmem:[#allocation9 + $0x1f0] sm:$0xff]
        %v664 = vld [vmem:[#allocation9 + $0x1f8] sm:$0xff]
        %v665 = vld [vmem:[#allocation9 + $0x200] sm:$0xff]
        %v666 = vld [vmem:[#allocation9 + $0x208] sm:$0xff]
        %v667 = vld [vmem:[#allocation9 + $0x210] sm:$0xff]
        %v668 = vld [vmem:[#allocation9 + $0x218] sm:$0xff]
        %v669 = vld [vmem:[#allocation9 + $0x220] sm:$0xff]
        %v670 = vld [vmem:[#allocation9 + $0x228] sm:$0xff]
        %v671 = vld [vmem:[#allocation9 + $0x230] sm:$0xff]
        %v672 = vld [vmem:[#allocation9 + $0x238] sm:$0xff]
        %v673 = vld [vmem:[#allocation9 + $0x240] sm:$0xff]
        %v674 = vld [vmem:[#allocation9 + $0x248] sm:$0xff]
        %v675 = vld [vmem:[#allocation9 + $0x250] sm:$0xff]
        %v676 = vld [vmem:[#allocation9 + $0x258] sm:$0xff]
        %v677 = vld [vmem:[#allocation9 + $0x260] sm:$0xff]
        %v678 = vld [vmem:[#allocation9 + $0x268] sm:$0xff]
        %v679 = vld [vmem:[#allocation9 + $0x270] sm:$0xff]
        %v680 = vld [vmem:[#allocation9 + $0x278] sm:$0xff]
        %v761 = vunpack.c.l.b16 %v601
        %v762 = vunpack.c.h.b16 %v601
        %v763 = vunpack.c.l.b16 %v602
        %v764 = vunpack.c.h.b16 %v602
        %v765 = vunpack.c.l.b16 %v603
        %v766 = vunpack.c.h.b16 %v603
        %v767 = vunpack.c.l.b16 %v604
        %v768 = vunpack.c.h.b16 %v604
        %v769 = vunpack.c.l.b16 %v605
        %v770 = vunpack.c.h.b16 %v605
        %v771 = vunpack.c.l.b16 %v606
        %v772 = vunpack.c.h.b16 %v606
        %v773 = vunpack.c.l.b16 %v607
        %v774 = vunpack.c.h.b16 %v607
        %v775 = vunpack.c.l.b16 %v608
        %v776 = vunpack.c.h.b16 %v608
        %v777 = vunpack.c.l.b16 %v609
        %v778 = vunpack.c.h.b16 %v609
        %v779 = vunpack.c.l.b16 %v610
        %v780 = vunpack.c.h.b16 %v610
        %v781 = vunpack.c.l.b16 %v611
        %v782 = vunpack.c.h.b16 %v611
        %v783 = vunpack.c.l.b16 %v612
        %v784 = vunpack.c.h.b16 %v612
        %v785 = vunpack.c.l.b16 %v613
        %v786 = vunpack.c.h.b16 %v613
        %v787 = vunpack.c.l.b16 %v614
        %v788 = vunpack.c.h.b16 %v614
        %v789 = vunpack.c.l.b16 %v615
        %v790 = vunpack.c.h.b16 %v615
        %v791 = vunpack.c.l.b16 %v616
        %v792 = vunpack.c.h.b16 %v616
        %v793 = vunpack.c.l.b16 %v617
        %v794 = vunpack.c.h.b16 %v617
        %v795 = vunpack.c.l.b16 %v618
        %v796 = vunpack.c.h.b16 %v618
        %v797 = vunpack.c.l.b16 %v619
        %v798 = vunpack.c.h.b16 %v619
        %v799 = vunpack.c.l.b16 %v620
        %v800 = vunpack.c.h.b16 %v620
        %v801 = vunpack.c.l.b16 %v621
        %v802 = vunpack.c.h.b16 %v621
        %v803 = vunpack.c.l.b16 %v622
        %v804 = vunpack.c.h.b16 %v622
        %v805 = vunpack.c.l.b16 %v623
        %v806 = vunpack.c.h.b16 %v623
        %v807 = vunpack.c.l.b16 %v624
        %v808 = vunpack.c.h.b16 %v624
        %v809 = vunpack.c.l.b16 %v625
        %v810 = vunpack.c.h.b16 %v625
        %v811 = vunpack.c.l.b16 %v626
        %v812 = vunpack.c.h.b16 %v626
        %v813 = vunpack.c.l.b16 %v627
        %v814 = vunpack.c.h.b16 %v627
        %v815 = vunpack.c.l.b16 %v628
        %v816 = vunpack.c.h.b16 %v628
        %v817 = vunpack.c.l.b16 %v629
        %v818 = vunpack.c.h.b16 %v629
        %v819 = vunpack.c.l.b16 %v630
        %v820 = vunpack.c.h.b16 %v630
        %v821 = vunpack.c.l.b16 %v631
        %v822 = vunpack.c.h.b16 %v631
        %v823 = vunpack.c.l.b16 %v632
        %v824 = vunpack.c.h.b16 %v632
        %v825 = vunpack.c.l.b16 %v633
        %v826 = vunpack.c.h.b16 %v633
        %v827 = vunpack.c.l.b16 %v634
        %v828 = vunpack.c.h.b16 %v634
        %v829 = vunpack.c.l.b16 %v635
        %v830 = vunpack.c.h.b16 %v635
        %v831 = vunpack.c.l.b16 %v636
        %v832 = vunpack.c.h.b16 %v636
        %v833 = vunpack.c.l.b16 %v637
        %v834 = vunpack.c.h.b16 %v637
        %v835 = vunpack.c.l.b16 %v638
        %v836 = vunpack.c.h.b16 %v638
        %v837 = vunpack.c.l.b16 %v639
        %v838 = vunpack.c.h.b16 %v639
        %v839 = vunpack.c.l.b16 %v640
        %v840 = vunpack.c.h.b16 %v640
        %v841 = vunpack.c.l.b16 %v641
        %v842 = vunpack.c.h.b16 %v641
        %v843 = vunpack.c.l.b16 %v642
        %v844 = vunpack.c.h.b16 %v642
        %v845 = vunpack.c.l.b16 %v643
        %v846 = vunpack.c.h.b16 %v643
        %v847 = vunpack.c.l.b16 %v644
        %v848 = vunpack.c.h.b16 %v644
        %v849 = vunpack.c.l.b16 %v645
        %v850 = vunpack.c.h.b16 %v645
        %v851 = vunpack.c.l.b16 %v646
        %v852 = vunpack.c.h.b16 %v646
        %v853 = vunpack.c.l.b16 %v647
        %v854 = vunpack.c.h.b16 %v647
        %v855 = vunpack.c.l.b16 %v648
        %v856 = vunpack.c.h.b16 %v648
        %v857 = vunpack.c.l.b16 %v649
        %v858 = vunpack.c.h.b16 %v649
        %v859 = vunpack.c.l.b16 %v650
        %v860 = vunpack.c.h.b16 %v650
        %v861 = vunpack.c.l.b16 %v651
        %v862 = vunpack.c.h.b16 %v651
        %v863 = vunpack.c.l.b16 %v652
        %v864 = vunpack.c.h.b16 %v652
        %v865 = vunpack.c.l.b16 %v653
        %v866 = vunpack.c.h.b16 %v653
        %v867 = vunpack.c.l.b16 %v654
        %v868 = vunpack.c.h.b16 %v654
        %v869 = vunpack.c.l.b16 %v655
        %v870 = vunpack.c.h.b16 %v655
        %v871 = vunpack.c.l.b16 %v656
        %v872 = vunpack.c.h.b16 %v656
        %v873 = vunpack.c.l.b16 %v657
        %v874 = vunpack.c.h.b16 %v657
        %v875 = vunpack.c.l.b16 %v658
        %v876 = vunpack.c.h.b16 %v658
        %v877 = vunpack.c.l.b16 %v659
        %v878 = vunpack.c.h.b16 %v659
        %v879 = vunpack.c.l.b16 %v660
        %v880 = vunpack.c.h.b16 %v660
        %v881 = vunpack.c.l.b16 %v661
        %v882 = vunpack.c.h.b16 %v661
        %v883 = vunpack.c.l.b16 %v662
        %v884 = vunpack.c.h.b16 %v662
        %v885 = vunpack.c.l.b16 %v663
        %v886 = vunpack.c.h.b16 %v663
        %v887 = vunpack.c.l.b16 %v664
        %v888 = vunpack.c.h.b16 %v664
        %v889 = vunpack.c.l.b16 %v665
        %v890 = vunpack.c.h.b16 %v665
        %v891 = vunpack.c.l.b16 %v666
        %v892 = vunpack.c.h.b16 %v666
        %v893 = vunpack.c.l.b16 %v667
        %v894 = vunpack.c.h.b16 %v667
        %v895 = vunpack.c.l.b16 %v668
        %v896 = vunpack.c.h.b16 %v668
        %v897 = vunpack.c.l.b16 %v669
        %v898 = vunpack.c.h.b16 %v669
        %v899 = vunpack.c.l.b16 %v670
        %v900 = vunpack.c.h.b16 %v670
        %v901 = vunpack.c.l.b16 %v671
        %v902 = vunpack.c.h.b16 %v671
        %v903 = vunpack.c.l.b16 %v672
        %v904 = vunpack.c.h.b16 %v672
        %v905 = vunpack.c.l.b16 %v673
        %v906 = vunpack.c.h.b16 %v673
        %v907 = vunpack.c.l.b16 %v674
        %v908 = vunpack.c.h.b16 %v674
        %v909 = vunpack.c.l.b16 %v675
        %v910 = vunpack.c.h.b16 %v675
        %v911 = vunpack.c.l.b16 %v676
        %v912 = vunpack.c.h.b16 %v676
        %v913 = vunpack.c.l.b16 %v677
        %v914 = vunpack.c.h.b16 %v677
        %v915 = vunpack.c.l.b16 %v678
        %v916 = vunpack.c.h.b16 %v678
        %v917 = vunpack.c.l.b16 %v679
        %v918 = vunpack.c.h.b16 %v679
        %v919 = vunpack.c.l.b16 %v680
        %v920 = vunpack.c.h.b16 %v680
        %v921 = vpack.c.b16 %v771, %v761
        %v922 = vpack.c.b16 %v772, %v762
        %v923 = vpack.c.b16 %v773, %v763
        %v924 = vpack.c.b16 %v774, %v764
        %v925 = vpack.c.b16 %v775, %v765
        %v926 = vpack.c.b16 %v776, %v766
        %v927 = vpack.c.b16 %v777, %v767
        %v928 = vpack.c.b16 %v778, %v768
        %v929 = vpack.c.b16 %v779, %v769
        %v930 = vpack.c.b16 %v780, %v770
        %v931 = vpack.c.b16 %v791, %v781
        %v932 = vpack.c.b16 %v792, %v782
        %v933 = vpack.c.b16 %v793, %v783
        %v934 = vpack.c.b16 %v794, %v784
        %v935 = vpack.c.b16 %v795, %v785
        %v936 = vpack.c.b16 %v796, %v786
        %v937 = vpack.c.b16 %v797, %v787
        %v938 = vpack.c.b16 %v798, %v788
        %v939 = vpack.c.b16 %v799, %v789
        %v940 = vpack.c.b16 %v800, %v790
        %v941 = vpack.c.b16 %v811, %v801
        %v942 = vpack.c.b16 %v812, %v802
        %v943 = vpack.c.b16 %v813, %v803
        %v944 = vpack.c.b16 %v814, %v804
        %v945 = vpack.c.b16 %v815, %v805
        %v946 = vpack.c.b16 %v816, %v806
        %v947 = vpack.c.b16 %v817, %v807
        %v948 = vpack.c.b16 %v818, %v808
        %v949 = vpack.c.b16 %v819, %v809
        %v950 = vpack.c.b16 %v820, %v810
        %v951 = vpack.c.b16 %v831, %v821
        %v952 = vpack.c.b16 %v832, %v822
        %v953 = vpack.c.b16 %v833, %v823
        %v954 = vpack.c.b16 %v834, %v824
        %v955 = vpack.c.b16 %v835, %v825
        %v956 = vpack.c.b16 %v836, %v826
        %v957 = vpack.c.b16 %v837, %v827
        %v958 = vpack.c.b16 %v838, %v828
        %v959 = vpack.c.b16 %v839, %v829
        %v960 = vpack.c.b16 %v840, %v830
        %v961 = vpack.c.b16 %v851, %v841
        %v962 = vpack.c.b16 %v852, %v842
        %v963 = vpack.c.b16 %v853, %v843
        %v964 = vpack.c.b16 %v854, %v844
        %v965 = vpack.c.b16 %v855, %v845
        %v966 = vpack.c.b16 %v856, %v846
        %v967 = vpack.c.b16 %v857, %v847
        %v968 = vpack.c.b16 %v858, %v848
        %v969 = vpack.c.b16 %v859, %v849
        %v970 = vpack.c.b16 %v860, %v850
        %v971 = vpack.c.b16 %v871, %v861
        %v972 = vpack.c.b16 %v872, %v862
        %v973 = vpack.c.b16 %v873, %v863
        %v974 = vpack.c.b16 %v874, %v864
        %v975 = vpack.c.b16 %v875, %v865
        %v976 = vpack.c.b16 %v876, %v866
        %v977 = vpack.c.b16 %v877, %v867
        %v978 = vpack.c.b16 %v878, %v868
        %v979 = vpack.c.b16 %v879, %v869
        %v980 = vpack.c.b16 %v880, %v870
        %v981 = vpack.c.b16 %v891, %v881
        %v982 = vpack.c.b16 %v892, %v882
        %v983 = vpack.c.b16 %v893, %v883
        %v984 = vpack.c.b16 %v894, %v884
        %v985 = vpack.c.b16 %v895, %v885
        %v986 = vpack.c.b16 %v896, %v886
        %v987 = vpack.c.b16 %v897, %v887
        %v988 = vpack.c.b16 %v898, %v888
        %v989 = vpack.c.b16 %v899, %v889
        %v990 = vpack.c.b16 %v900, %v890
        %v991 = vpack.c.b16 %v911, %v901
        %v992 = vpack.c.b16 %v912, %v902
        %v993 = vpack.c.b16 %v913, %v903
        %v994 = vpack.c.b16 %v914, %v904
        %v995 = vpack.c.b16 %v915, %v905
        %v996 = vpack.c.b16 %v916, %v906
        %v997 = vpack.c.b16 %v917, %v907
        %v998 = vpack.c.b16 %v918, %v908
        %v999 = vpack.c.b16 %v919, %v909
        %v1000 = vpack.c.b16 %v920, %v910
        %1081 = vmatprep.subr.bf16.mxu0 %v922
        %1082 = vmatpush1.bf16.msra.mxu0 %v921
        %1083 = vmatprep.subr.bf16.mxu0 %v932
        %1084 = vmatpush1.bf16.msra.mxu0 %v931
        %1085 = vmatprep.subr.bf16.mxu0 %v942
        %1086 = vmatpush1.bf16.msra.mxu0 %v941
        %1087 = vmatprep.subr.bf16.mxu0 %v952
        %1088 = vmatpush1.bf16.msra.mxu0 %v951
        %1089 = vmatprep.subr.bf16.mxu0 %v962
        %1090 = vmatpush1.bf16.msra.mxu0 %v961
        %1091 = vmatprep.subr.bf16.mxu0 %v972
        %1092 = vmatpush1.bf16.msra.mxu0 %v971
        %1093 = vmatprep.subr.bf16.mxu0 %v982
        %1094 = vmatpush1.bf16.msra.mxu0 %v981
        %1095 = vmatprep.subr.bf16.mxu0 %v992
        %1096 = vmatpush1.bf16.msra.mxu0 %v991
        %1097 = vmatprep.subr.bf16.mxu0 0
        %1098 = vmatpush1.bf16.msra.mxu0 0
        %1099 = vmatprep.subr.bf16.mxu0 0
        %1100 = vmatpush1.bf16.msra.mxu0 0
        %1101 = vmatprep.subr.bf16.mxu0 0
        %1102 = vmatpush1.bf16.msra.mxu0 0
        %1103 = vmatprep.subr.bf16.mxu0 0
        %1104 = vmatpush1.bf16.msra.mxu0 0
        %1105 = vmatprep.subr.bf16.mxu0 0
        %1106 = vmatpush1.bf16.msra.mxu0 0
        %1107 = vmatprep.subr.bf16.mxu0 0
        %1108 = vmatpush1.bf16.msra.mxu0 0
        %1109 = vmatprep.subr.bf16.mxu0 0
        %1110 = vmatpush1.bf16.msra.mxu0 0
        %1111 = vmatprep.subr.bf16.mxu0 0
        %1112 = vmatpush1.bf16.msra.mxu0 0
        %1113 = vmatprep.mubr.bf16.mxu0 0
        %1114 = vmatmul.mubr.bf16.gmra.mrb[0].mxu0 %v597
        %v1115 = vpop.f32.mrb[0].mxu0
        %v1116 = vadd.f32 0.0, %v1115
        %v1117 = vpop.f32.mrb[0].mxu0
        %v1118 = vadd.f32 0.0, %v1117
        %v1119 = vpop.f32.mrb[0].mxu0
        %v1120 = vadd.f32 0.0, %v1119
        %v1121 = vpop.f32.mrb[0].mxu0
        %v1122 = vadd.f32 0.0, %v1121
        %1123 = vmatprep.mubr.bf16.mxu0 0
        %1124 = vmatmul.mubr.bf16.gmra.mrb[0].mxu0 %v598
        %v1125 = vpop.f32.mrb[0].mxu0
        %v1126 = vadd.f32 0.0, %v1125
        %v1127 = vpop.f32.mrb[0].mxu0
        %v1128 = vadd.f32 0.0, %v1127
        %v1129 = vpop.f32.mrb[0].mxu0
        %v1130 = vadd.f32 0.0, %v1129
        %v1131 = vpop.f32.mrb[0].mxu0
        %v1132 = vadd.f32 0.0, %v1131
        %1133 = vmatprep.mubr.bf16.mxu0 0
        %1134 = vmatmul.mubr.bf16.gmra.mrb[0].mxu0 %v599
        %v1135 = vpop.f32.mrb[0].mxu0
        %v1136 = vadd.f32 0.0, %v1135
        %v1137 = vpop.f32.mrb[0].mxu0
        %v1138 = vadd.f32 0.0, %v1137
        %v1139 = vpop.f32.mrb[0].mxu0
        %v1140 = vadd.f32 0.0, %v1139
        %v1141 = vpop.f32.mrb[0].mxu0
        %v1142 = vadd.f32 0.0, %v1141
        %1143 = vmatprep.mubr.bf16.mxu0 0
        %1144 = vmatmul.mubr.bf16.gmra.mrb[0].mxu0 %v600
        %v1145 = vpop.f32.mrb[0].mxu0
        %v1146 = vadd.f32 0.0, %v1145
        %v1147 = vpop.f32.mrb[0].mxu0
        %v1148 = vadd.f32 0.0, %v1147
        %v1149 = vpop.f32.mrb[0].mxu0
        %v1150 = vadd.f32 0.0, %v1149
        %v1151 = vpop.f32.mrb[0].mxu0
        %v1152 = vadd.f32 0.0, %v1151
        %1153 = vdwg.mxu0
        %1154 = vmatprep.subr.bf16.mxu0 %v924
        %1155 = vmatpush1.bf16.msra.mxu0 %v923
        %1156 = vmatprep.subr.bf16.mxu0 %v934
        %1157 = vmatpush1.bf16.msra.mxu0 %v933
        %1158 = vmatprep.subr.bf16.mxu0 %v944
        %1159 = vmatpush1.bf16.msra.mxu0 %v943
        %1160 = vmatprep.subr.bf16.mxu0 %v954
        %1161 = vmatpush1.bf16.msra.mxu0 %v953
        %1162 = vmatprep.subr.bf16.mxu0 %v964
        %1163 = vmatpush1.bf16.msra.mxu0 %v963
        %1164 = vmatprep.subr.bf16.mxu0 %v974
        %1165 = vmatpush1.bf16.msra.mxu0 %v973
        %1166 = vmatprep.subr.bf16.mxu0 %v984
        %1167 = vmatpush1.bf16.msra.mxu0 %v983
        %1168 = vmatprep.subr.bf16.mxu0 %v994
        %1169 = vmatpush1.bf16.msra.mxu0 %v993
        %1170 = vmatprep.subr.bf16.mxu0 0
        %1171 = vmatpush1.bf16.msra.mxu0 0
        %1172 = vmatprep.subr.bf16.mxu0 0
        %1173 = vmatpush1.bf16.msra.mxu0 0
        %1174 = vmatprep.subr.bf16.mxu0 0
        %1175 = vmatpush1.bf16.msra.mxu0 0
        %1176 = vmatprep.subr.bf16.mxu0 0
        %1177 = vmatpush1.bf16.msra.mxu0 0
        %1178 = vmatprep.subr.bf16.mxu0 0
        %1179 = vmatpush1.bf16.msra.mxu0 0
        %1180 = vmatprep.subr.bf16.mxu0 0
        %1181 = vmatpush1.bf16.msra.mxu0 0
        %1182 = vmatprep.subr.bf16.mxu0 0
        %1183 = vmatpush1.bf16.msra.mxu0 0
        %1184 = vmatprep.subr.bf16.mxu0 0
        %1185 = vmatpush1.bf16.msra.mxu0 0
        %1186 = vmatprep.mubr.bf16.mxu0 0
        %1187 = vmatmul.mubr.bf16.gmra.mrb[0].mxu0 %v597
        %v1188 = vpop.f32.mrb[0].mxu0
        %v1189 = vadd.f32 0.0, %v1188
        %v1190 = vpop.f32.mrb[0].mxu0
        %v1191 = vadd.f32 0.0, %v1190
        %v1192 = vpop.f32.mrb[0].mxu0
        %v1193 = vadd.f32 0.0, %v1192
        %v1194 = vpop.f32.mrb[0].mxu0
        %v1195 = vadd.f32 0.0, %v1194
        %1196 = vmatprep.mubr.bf16.mxu0 0
        %1197 = vmatmul.mubr.bf16.gmra.mrb[0].mxu0 %v598
        %v1198 = vpop.f32.mrb[0].mxu0
        %v1199 = vadd.f32 0.0, %v1198
        %v1200 = vpop.f32.mrb[0].mxu0
        %v1201 = vadd.f32 0.0, %v1200
        %v1202 = vpop.f32.mrb[0].mxu0
        %v1203 = vadd.f32 0.0, %v1202
        %v1204 = vpop.f32.mrb[0].mxu0
        %v1205 = vadd.f32 0.0, %v1204
        %1206 = vmatprep.mubr.bf16.mxu0 0
        %1207 = vmatmul.mubr.bf16.gmra.mrb[0].mxu0 %v599
        %v1208 = vpop.f32.mrb[0].mxu0
        %v1209 = vadd.f32 0.0, %v1208
        %v1210 = vpop.f32.mrb[0].mxu0
        %v1211 = vadd.f32 0.0, %v1210
        %v1212 = vpop.f32.mrb[0].mxu0
        %v1213 = vadd.f32 0.0, %v1212
        %v1214 = vpop.f32.mrb[0].mxu0
        %v1215 = vadd.f32 0.0, %v1214
        %1216 = vmatprep.mubr.bf16.mxu0 0
        %1217 = vmatmul.mubr.bf16.gmra.mrb[0].mxu0 %v600
        %v1218 = vpop.f32.mrb[0].mxu0
        %v1219 = vadd.f32 0.0, %v1218
        %v1220 = vpop.f32.mrb[0].mxu0
        %v1221 = vadd.f32 0.0, %v1220
        %v1222 = vpop.f32.mrb[0].mxu0
        %v1223 = vadd.f32 0.0, %v1222
        %v1224 = vpop.f32.mrb[0].mxu0
        %v1225 = vadd.f32 0.0, %v1224
        %1226 = vdwg.mxu0
        %1227 = vmatprep.subr.bf16.mxu0 %v926
        %1228 = vmatpush1.bf16.msra.mxu0 %v925
        %1229 = vmatprep.subr.bf16.mxu0 %v936
        %1230 = vmatpush1.bf16.msra.mxu0 %v935
        %1231 = vmatprep.subr.bf16.mxu0 %v946
        %1232 = vmatpush1.bf16.msra.mxu0 %v945
        %1233 = vmatprep.subr.bf16.mxu0 %v956
        %1234 = vmatpush1.bf16.msra.mxu0 %v955
        %1235 = vmatprep.subr.bf16.mxu0 %v966
        %1236 = vmatpush1.bf16.msra.mxu0 %v965
        %1237 = vmatprep.subr.bf16.mxu0 %v976
        %1238 = vmatpush1.bf16.msra.mxu0 %v975
        %1239 = vmatprep.subr.bf16.mxu0 %v986
        %1240 = vmatpush1.bf16.msra.mxu0 %v985
        %1241 = vmatprep.subr.bf16.mxu0 %v996
        %1242 = vmatpush1.bf16.msra.mxu0 %v995
        %1243 = vmatprep.subr.bf16.mxu0 0
        %1244 = vmatpush1.bf16.msra.mxu0 0
        %1245 = vmatprep.subr.bf16.mxu0 0
        %1246 = vmatpush1.bf16.msra.mxu0 0
        %1247 = vmatprep.subr.bf16.mxu0 0
        %1248 = vmatpush1.bf16.msra.mxu0 0
        %1249 = vmatprep.subr.bf16.mxu0 0
        %1250 = vmatpush1.bf16.msra.mxu0 0
        %1251 = vmatprep.subr.bf16.mxu0 0
        %1252 = vmatpush1.bf16.msra.mxu0 0
        %1253 = vmatprep.subr.bf16.mxu0 0
        %1254 = vmatpush1.bf16.msra.mxu0 0
        %1255 = vmatprep.subr.bf16.mxu0 0
        %1256 = vmatpush1.bf16.msra.mxu0 0
        %1257 = vmatprep.subr.bf16.mxu0 0
        %1258 = vmatpush1.bf16.msra.mxu0 0
        %1259 = vmatprep.mubr.bf16.mxu0 0
        %1260 = vmatmul.mubr.bf16.gmra.mrb[0].mxu0 %v597
        %v1261 = vpop.f32.mrb[0].mxu0
        %v1262 = vadd.f32 0.0, %v1261
        %v1263 = vpop.f32.mrb[0].mxu0
        %v1264 = vadd.f32 0.0, %v1263
        %v1265 = vpop.f32.mrb[0].mxu0
        %v1266 = vadd.f32 0.0, %v1265
        %v1267 = vpop.f32.mrb[0].mxu0
        %v1268 = vadd.f32 0.0, %v1267
        %1269 = vmatprep.mubr.bf16.mxu0 0
        %1270 = vmatmul.mubr.bf16.gmra.mrb[0].mxu0 %v598
        %v1271 = vpop.f32.mrb[0].mxu0
        %v1272 = vadd.f32 0.0, %v1271
        %v1273 = vpop.f32.mrb[0].mxu0
        %v1274 = vadd.f32 0.0, %v1273
        %v1275 = vpop.f32.mrb[0].mxu0
        %v1276 = vadd.f32 0.0, %v1275
        %v1277 = vpop.f32.mrb[0].mxu0
        %v1278 = vadd.f32 0.0, %v1277
        %1279 = vmatprep.mubr.bf16.mxu0 0
        %1280 = vmatmul.mubr.bf16.gmra.mrb[0].mxu0 %v599
        %v1281 = vpop.f32.mrb[0].mxu0
        %v1282 = vadd.f32 0.0, %v1281
        %v1283 = vpop.f32.mrb[0].mxu0
        %v1284 = vadd.f32 0.0, %v1283
        %v1285 = vpop.f32.mrb[0].mxu0
        %v1286 = vadd.f32 0.0, %v1285
        %v1287 = vpop.f32.mrb[0].mxu0
        %v1288 = vadd.f32 0.0, %v1287
        %1289 = vmatprep.mubr.bf16.mxu0 0
        %1290 = vmatmul.mubr.bf16.gmra.mrb[0].mxu0 %v600
        %v1291 = vpop.f32.mrb[0].mxu0
        %v1292 = vadd.f32 0.0, %v1291
        %v1293 = vpop.f32.mrb[0].mxu0
        %v1294 = vadd.f32 0.0, %v1293
        %v1295 = vpop.f32.mrb[0].mxu0
        %v1296 = vadd.f32 0.0, %v1295
        %v1297 = vpop.f32.mrb[0].mxu0
        %v1298 = vadd.f32 0.0, %v1297
        %1299 = vdwg.mxu0
        %1300 = vmatprep.subr.bf16.mxu0 %v928
        %1301 = vmatpush1.bf16.msra.mxu0 %v927
        %1302 = vmatprep.subr.bf16.mxu0 %v938
        %1303 = vmatpush1.bf16.msra.mxu0 %v937
        %1304 = vmatprep.subr.bf16.mxu0 %v948
        %1305 = vmatpush1.bf16.msra.mxu0 %v947
        %1306 = vmatprep.subr.bf16.mxu0 %v958
        %1307 = vmatpush1.bf16.msra.mxu0 %v957
        %1308 = vmatprep.subr.bf16.mxu0 %v968
        %1309 = vmatpush1.bf16.msra.mxu0 %v967
        %1310 = vmatprep.subr.bf16.mxu0 %v978
        %1311 = vmatpush1.bf16.msra.mxu0 %v977
        %1312 = vmatprep.subr.bf16.mxu0 %v988
        %1313 = vmatpush1.bf16.msra.mxu0 %v987
        %1314 = vmatprep.subr.bf16.mxu0 %v998
        %1315 = vmatpush1.bf16.msra.mxu0 %v997
        %1316 = vmatprep.subr.bf16.mxu0 0
        %1317 = vmatpush1.bf16.msra.mxu0 0
        %1318 = vmatprep.subr.bf16.mxu0 0
        %1319 = vmatpush1.bf16.msra.mxu0 0
        %1320 = vmatprep.subr.bf16.mxu0 0
        %1321 = vmatpush1.bf16.msra.mxu0 0
        %1322 = vmatprep.subr.bf16.mxu0 0
        %1323 = vmatpush1.bf16.msra.mxu0 0
        %1324 = vmatprep.subr.bf16.mxu0 0
        %1325 = vmatpush1.bf16.msra.mxu0 0
        %1326 = vmatprep.subr.bf16.mxu0 0
        %1327 = vmatpush1.bf16.msra.mxu0 0
        %1328 = vmatprep.subr.bf16.mxu0 0
        %1329 = vmatpush1.bf16.msra.mxu0 0
        %1330 = vmatprep.subr.bf16.mxu0 0
        %1331 = vmatpush1.bf16.msra.mxu0 0
        %1332 = vmatprep.mubr.bf16.mxu0 0
        %1333 = vmatmul.mubr.bf16.gmra.mrb[0].mxu0 %v597
        %v1334 = vpop.f32.mrb[0].mxu0
        %v1335 = vadd.f32 0.0, %v1334
        %v1336 = vpop.f32.mrb[0].mxu0
        %v1337 = vadd.f32 0.0, %v1336
        %v1338 = vpop.f32.mrb[0].mxu0
        %v1339 = vadd.f32 0.0, %v1338
        %v1340 = vpop.f32.mrb[0].mxu0
        %v1341 = vadd.f32 0.0, %v1340
        %1342 = vmatprep.mubr.bf16.mxu0 0
        %1343 = vmatmul.mubr.bf16.gmra.mrb[0].mxu0 %v598
        %v1344 = vpop.f32.mrb[0].mxu0
        %v1345 = vadd.f32 0.0, %v1344
        %v1346 = vpop.f32.mrb[0].mxu0
        %v1347 = vadd.f32 0.0, %v1346
        %v1348 = vpop.f32.mrb[0].mxu0
        %v1349 = vadd.f32 0.0, %v1348
        %v1350 = vpop.f32.mrb[0].mxu0
        %v1351 = vadd.f32 0.0, %v1350
        %1352 = vmatprep.mubr.bf16.mxu0 0
        %1353 = vmatmul.mubr.bf16.gmra.mrb[0].mxu0 %v599
        %v1354 = vpop.f32.mrb[0].mxu0
        %v1355 = vadd.f32 0.0, %v1354
        %v1356 = vpop.f32.mrb[0].mxu0
        %v1357 = vadd.f32 0.0, %v1356
        %v1358 = vpop.f32.mrb[0].mxu0
        %v1359 = vadd.f32 0.0, %v1358
        %v1360 = vpop.f32.mrb[0].mxu0
        %v1361 = vadd.f32 0.0, %v1360
        %1362 = vmatprep.mubr.bf16.mxu0 0
        %1363 = vmatmul.mubr.bf16.gmra.mrb[0].mxu0 %v600
        %v1364 = vpop.f32.mrb[0].mxu0
        %v1365 = vadd.f32 0.0, %v1364
        %v1366 = vpop.f32.mrb[0].mxu0
        %v1367 = vadd.f32 0.0, %v1366
        %v1368 = vpop.f32.mrb[0].mxu0
        %v1369 = vadd.f32 0.0, %v1368
        %v1370 = vpop.f32.mrb[0].mxu0
        %v1371 = vadd.f32 0.0, %v1370
        %1372 = vdwg.mxu0
        %1373 = vmatprep.subr.bf16.mxu0 %v930
        %1374 = vmatpush1.bf16.msra.mxu0 %v929
        %1375 = vmatprep.subr.bf16.mxu0 %v940
        %1376 = vmatpush1.bf16.msra.mxu0 %v939
        %1377 = vmatprep.subr.bf16.mxu0 %v950
        %1378 = vmatpush1.bf16.msra.mxu0 %v949
        %1379 = vmatprep.subr.bf16.mxu0 %v960
        %1380 = vmatpush1.bf16.msra.mxu0 %v959
        %1381 = vmatprep.subr.bf16.mxu0 %v970
        %1382 = vmatpush1.bf16.msra.mxu0 %v969
        %1383 = vmatprep.subr.bf16.mxu0 %v980
        %1384 = vmatpush1.bf16.msra.mxu0 %v979
        %1385 = vmatprep.subr.bf16.mxu0 %v990
        %1386 = vmatpush1.bf16.msra.mxu0 %v989
        %1387 = vmatprep.subr.bf16.mxu0 %v1000
        %1388 = vmatpush1.bf16.msra.mxu0 %v999
        %1389 = vmatprep.subr.bf16.mxu0 0
        %1390 = vmatpush1.bf16.msra.mxu0 0
        %1391 = vmatprep.subr.bf16.mxu0 0
        %1392 = vmatpush1.bf16.msra.mxu0 0
        %1393 = vmatprep.subr.bf16.mxu0 0
        %1394 = vmatpush1.bf16.msra.mxu0 0
        %1395 = vmatprep.subr.bf16.mxu0 0
        %1396 = vmatpush1.bf16.msra.mxu0 0
        %1397 = vmatprep.subr.bf16.mxu0 0
        %1398 = vmatpush1.bf16.msra.mxu0 0
        %1399 = vmatprep.subr.bf16.mxu0 0
        %1400 = vmatpush1.bf16.msra.mxu0 0
        %1401 = vmatprep.subr.bf16.mxu0 0
        %1402 = vmatpush1.bf16.msra.mxu0 0
        %1403 = vmatprep.subr.bf16.mxu0 0
        %1404 = vmatpush1.bf16.msra.mxu0 0
        %1405 = vmatprep.mubr.bf16.mxu0 0
        %1406 = vmatmul.mubr.bf16.gmra.mrb[0].mxu0 %v597
        %v1407 = vpop.f32.mrb[0].mxu0
        %v1408 = vadd.f32 0.0, %v1407
        %v1409 = vpop.f32.mrb[0].mxu0
        %v1410 = vadd.f32 0.0, %v1409
        %v1411 = vpop.f32.mrb[0].mxu0
        %v1412 = vadd.f32 0.0, %v1411
        %v1413 = vpop.f32.mrb[0].mxu0
        %v1414 = vadd.f32 0.0, %v1413
        %1415 = vmatprep.mubr.bf16.mxu0 0
        %1416 = vmatmul.mubr.bf16.gmra.mrb[0].mxu0 %v598
        %v1417 = vpop.f32.mrb[0].mxu0
        %v1418 = vadd.f32 0.0, %v1417
        %v1419 = vpop.f32.mrb[0].mxu0
        %v1420 = vadd.f32 0.0, %v1419
        %v1421 = vpop.f32.mrb[0].mxu0
        %v1422 = vadd.f32 0.0, %v1421
        %v1423 = vpop.f32.mrb[0].mxu0
        %v1424 = vadd.f32 0.0, %v1423
        %1425 = vmatprep.mubr.bf16.mxu0 0
        %1426 = vmatmul.mubr.bf16.gmra.mrb[0].mxu0 %v599
        %v1427 = vpop.f32.mrb[0].mxu0
        %v1428 = vadd.f32 0.0, %v1427
        %v1429 = vpop.f32.mrb[0].mxu0
        %v1430 = vadd.f32 0.0, %v1429
        %v1431 = vpop.f32.mrb[0].mxu0
        %v1432 = vadd.f32 0.0, %v1431
        %v1433 = vpop.f32.mrb[0].mxu0
        %v1434 = vadd.f32 0.0, %v1433
        %1435 = vmatprep.mubr.bf16.mxu0 0
        %1436 = vmatmul.mubr.bf16.gmra.mrb[0].mxu0 %v600
        %v1437 = vpop.f32.mrb[0].mxu0
        %v1438 = vadd.f32 0.0, %v1437
        %v1439 = vpop.f32.mrb[0].mxu0
        %v1440 = vadd.f32 0.0, %v1439
        %v1441 = vpop.f32.mrb[0].mxu0
        %v1442 = vadd.f32 0.0, %v1441
        %v1443 = vpop.f32.mrb[0].mxu0
        %v1444 = vadd.f32 0.0, %v1443
        %1445 = vdwg.mxu0
        %v1446 = vpack.c.bf16 %v1120, %v1116
        %v1447 = vpack.c.bf16 %v1122, %v1118
        %v1448 = vpack.c.bf16 %v1193, %v1189
        %v1449 = vpack.c.bf16 %v1195, %v1191
        %v1450 = vpack.c.bf16 %v1266, %v1262
        %v1451 = vpack.c.bf16 %v1268, %v1264
        %v1452 = vpack.c.bf16 %v1339, %v1335
        %v1453 = vpack.c.bf16 %v1341, %v1337
        %v1454 = vpack.c.bf16 %v1412, %v1408
        %v1455 = vpack.c.bf16 %v1414, %v1410
        %v1456 = vpack.c.bf16 %v1130, %v1126
        %v1457 = vpack.c.bf16 %v1132, %v1128
        %v1458 = vpack.c.bf16 %v1203, %v1199
        %v1459 = vpack.c.bf16 %v1205, %v1201
        %v1460 = vpack.c.bf16 %v1276, %v1272
        %v1461 = vpack.c.bf16 %v1278, %v1274
        %v1462 = vpack.c.bf16 %v1349, %v1345
        %v1463 = vpack.c.bf16 %v1351, %v1347
        %v1464 = vpack.c.bf16 %v1422, %v1418
        %v1465 = vpack.c.bf16 %v1424, %v1420
        %v1466 = vpack.c.bf16 %v1140, %v1136
        %v1467 = vpack.c.bf16 %v1142, %v1138
        %v1468 = vpack.c.bf16 %v1213, %v1209
        %v1469 = vpack.c.bf16 %v1215, %v1211
        %v1470 = vpack.c.bf16 %v1286, %v1282
        %v1471 = vpack.c.bf16 %v1288, %v1284
        %v1472 = vpack.c.bf16 %v1359, %v1355
        %v1473 = vpack.c.bf16 %v1361, %v1357
        %v1474 = vpack.c.bf16 %v1432, %v1428
        %v1475 = vpack.c.bf16 %v1434, %v1430
        %v1476 = vpack.c.bf16 %v1150, %v1146
        %v1477 = vpack.c.bf16 %v1152, %v1148
        %v1478 = vpack.c.bf16 %v1223, %v1219
        %v1479 = vpack.c.bf16 %v1225, %v1221
        %v1480 = vpack.c.bf16 %v1296, %v1292
        %v1481 = vpack.c.bf16 %v1298, %v1294
        %v1482 = vpack.c.bf16 %v1369, %v1365
        %v1483 = vpack.c.bf16 %v1371, %v1367
        %v1484 = vpack.c.bf16 %v1442, %v1438
        %v1485 = vpack.c.bf16 %v1444, %v1440
        %v1486 = vld [vmem:[#allocation11] sm:$0xff]
        %v1487 = vld [vmem:[#allocation11 + $0x8] sm:$0x3]
        %v1490 = vlaneseq
        %v1491 = vshrl.u32 %v1490, 7
        %v1492 = vsub.s32 0, %v1491
        %v1493 = vrot.slane %v1486, %v1492
        %v1494 = vlaneseq
        %v1495 = vshrl.u32 %v1494, 7
        %v1496 = vsub.s32 1, %v1495
        %v1497 = vrot.slane %v1486, %v1496
        %v1498 = vlaneseq
        %v1499 = vshrl.u32 %v1498, 7
        %v1500 = vsub.s32 2, %v1499
        %v1501 = vrot.slane %v1486, %v1500
        %v1502 = vlaneseq
        %v1503 = vshrl.u32 %v1502, 7
        %v1504 = vsub.s32 3, %v1503
        %v1505 = vrot.slane %v1486, %v1504
        %v1506 = vlaneseq
        %v1507 = vshrl.u32 %v1506, 7
        %v1508 = vsub.s32 4, %v1507
        %v1509 = vrot.slane %v1486, %v1508
        %v1510 = vlaneseq
        %v1511 = vshrl.u32 %v1510, 7
        %v1512 = vsub.s32 5, %v1511
        %v1513 = vrot.slane %v1486, %v1512
        %v1514 = vlaneseq
        %v1515 = vshrl.u32 %v1514, 7
        %v1516 = vsub.s32 6, %v1515
        %v1517 = vrot.slane %v1486, %v1516
        %v1518 = vlaneseq
        %v1519 = vshrl.u32 %v1518, 7
        %v1520 = vsub.s32 7, %v1519
        %v1521 = vrot.slane %v1486, %v1520
        %v1522 = vlaneseq
        %v1523 = vshrl.u32 %v1522, 7
        %v1524 = vsub.s32 0, %v1523
        %v1525 = vrot.slane %v1487, %v1524
        %v1526 = vlaneseq
        %v1527 = vshrl.u32 %v1526, 7
        %v1528 = vsub.s32 1, %v1527
        %v1529 = vrot.slane %v1487, %v1528
        %v1540 = vpack.c.bf16 %v1493, %v1493
        %v1541 = vpack.c.bf16 %v1497, %v1497
        %v1542 = vpack.c.bf16 %v1501, %v1501
        %v1543 = vpack.c.bf16 %v1505, %v1505
        %v1544 = vpack.c.bf16 %v1509, %v1509
        %v1545 = vpack.c.bf16 %v1513, %v1513
        %v1546 = vpack.c.bf16 %v1517, %v1517
        %v1547 = vpack.c.bf16 %v1521, %v1521
        %v1548 = vpack.c.bf16 %v1525, %v1525
        %v1549 = vpack.c.bf16 %v1529, %v1529
        %v1551 = vpack.i.b16 %v1540, %v1540
        %v1553 = vlaneseq
        %v1554 = vshrl.u32 %v1553, 7
        %v1555 = vsub.s32 0, %v1554
        %v1556 = vrot.slane %v1551, %v1555
        %v1558 = vpack.i.b16 %v1541, %v1541
        %v1560 = vlaneseq
        %v1561 = vshrl.u32 %v1560, 7
        %v1562 = vsub.s32 0, %v1561
        %v1563 = vrot.slane %v1558, %v1562
        %v1565 = vpack.i.b16 %v1542, %v1542
        %v1567 = vlaneseq
        %v1568 = vshrl.u32 %v1567, 7
        %v1569 = vsub.s32 0, %v1568
        %v1570 = vrot.slane %v1565, %v1569
        %v1572 = vpack.i.b16 %v1543, %v1543
        %v1574 = vlaneseq
        %v1575 = vshrl.u32 %v1574, 7
        %v1576 = vsub.s32 0, %v1575
        %v1577 = vrot.slane %v1572, %v1576
        %v1579 = vpack.i.b16 %v1544, %v1544
        %v1581 = vlaneseq
        %v1582 = vshrl.u32 %v1581, 7
        %v1583 = vsub.s32 0, %v1582
        %v1584 = vrot.slane %v1579, %v1583
        %v1586 = vpack.i.b16 %v1545, %v1545
        %v1588 = vlaneseq
        %v1589 = vshrl.u32 %v1588, 7
        %v1590 = vsub.s32 0, %v1589
        %v1591 = vrot.slane %v1586, %v1590
        %v1593 = vpack.i.b16 %v1546, %v1546
        %v1595 = vlaneseq
        %v1596 = vshrl.u32 %v1595, 7
        %v1597 = vsub.s32 0, %v1596
        %v1598 = vrot.slane %v1593, %v1597
        %v1600 = vpack.i.b16 %v1547, %v1547
        %v1602 = vlaneseq
        %v1603 = vshrl.u32 %v1602, 7
        %v1604 = vsub.s32 0, %v1603
        %v1605 = vrot.slane %v1600, %v1604
        %v1607 = vpack.i.b16 %v1548, %v1548
        %v1609 = vlaneseq
        %v1610 = vshrl.u32 %v1609, 7
        %v1611 = vsub.s32 0, %v1610
        %v1612 = vrot.slane %v1607, %v1611
        %v1614 = vpack.i.b16 %v1549, %v1549
        %v1616 = vlaneseq
        %v1617 = vshrl.u32 %v1616, 7
        %v1618 = vsub.s32 0, %v1617
        %v1619 = vrot.slane %v1614, %v1618
        %v1620 = vadd.bf16 %v1446, %v1556
        %v1621 = vadd.bf16 %v1447, %v1563
        %v1622 = vadd.bf16 %v1448, %v1570
        %v1623 = vadd.bf16 %v1449, %v1577
        %v1624 = vadd.bf16 %v1450, %v1584
        %v1625 = vadd.bf16 %v1451, %v1591
        %v1626 = vadd.bf16 %v1452, %v1598
        %v1627 = vadd.bf16 %v1453, %v1605
        %v1628 = vadd.bf16 %v1454, %v1612
        %v1629 = vadd.bf16 %v1455, %v1619
        %v1630 = vadd.bf16 %v1456, %v1556
        %v1631 = vadd.bf16 %v1457, %v1563
        %v1632 = vadd.bf16 %v1458, %v1570
        %v1633 = vadd.bf16 %v1459, %v1577
        %v1634 = vadd.bf16 %v1460, %v1584
        %v1635 = vadd.bf16 %v1461, %v1591
        %v1636 = vadd.bf16 %v1462, %v1598
        %v1637 = vadd.bf16 %v1463, %v1605
        %v1638 = vadd.bf16 %v1464, %v1612
        %v1639 = vadd.bf16 %v1465, %v1619
        %v1640 = vadd.bf16 %v1466, %v1556
        %v1641 = vadd.bf16 %v1467, %v1563
        %v1642 = vadd.bf16 %v1468, %v1570
        %v1643 = vadd.bf16 %v1469, %v1577
        %v1644 = vadd.bf16 %v1470, %v1584
        %v1645 = vadd.bf16 %v1471, %v1591
        %v1646 = vadd.bf16 %v1472, %v1598
        %v1647 = vadd.bf16 %v1473, %v1605
        %v1648 = vadd.bf16 %v1474, %v1612
        %v1649 = vadd.bf16 %v1475, %v1619
        %v1650 = vadd.bf16 %v1476, %v1556
        %v1651 = vadd.bf16 %v1477, %v1563
        %v1652 = vadd.bf16 %v1478, %v1570
        %v1653 = vadd.bf16 %v1479, %v1577
        %v1654 = vadd.bf16 %v1480, %v1584
        %v1655 = vadd.bf16 %v1481, %v1591
        %v1656 = vadd.bf16 %v1482, %v1598
        %v1657 = vadd.bf16 %v1483, %v1605
        %v1658 = vadd.bf16 %v1484, %v1612
        %v1659 = vadd.bf16 %v1485, %v1619
        %v1660 = vxor.u32 %v1620, 2147516416
        %v1661 = vxor.u32 %v1621, 2147516416
        %v1662 = vxor.u32 %v1622, 2147516416
        %v1663 = vxor.u32 %v1623, 2147516416
        %v1664 = vxor.u32 %v1624, 2147516416
        %v1665 = vxor.u32 %v1625, 2147516416
        %v1666 = vxor.u32 %v1626, 2147516416
        %v1667 = vxor.u32 %v1627, 2147516416
        %v1668 = vxor.u32 %v1628, 2147516416
        %v1669 = vxor.u32 %v1629, 2147516416
        %v1670 = vxor.u32 %v1630, 2147516416
        %v1671 = vxor.u32 %v1631, 2147516416
        %v1672 = vxor.u32 %v1632, 2147516416
        %v1673 = vxor.u32 %v1633, 2147516416
        %v1674 = vxor.u32 %v1634, 2147516416
        %v1675 = vxor.u32 %v1635, 2147516416
        %v1676 = vxor.u32 %v1636, 2147516416
        %v1677 = vxor.u32 %v1637, 2147516416
        %v1678 = vxor.u32 %v1638, 2147516416
        %v1679 = vxor.u32 %v1639, 2147516416
        %v1680 = vxor.u32 %v1640, 2147516416
        %v1681 = vxor.u32 %v1641, 2147516416
        %v1682 = vxor.u32 %v1642, 2147516416
        %v1683 = vxor.u32 %v1643, 2147516416
        %v1684 = vxor.u32 %v1644, 2147516416
        %v1685 = vxor.u32 %v1645, 2147516416
        %v1686 = vxor.u32 %v1646, 2147516416
        %v1687 = vxor.u32 %v1647, 2147516416
        %v1688 = vxor.u32 %v1648, 2147516416
        %v1689 = vxor.u32 %v1649, 2147516416
        %v1690 = vxor.u32 %v1650, 2147516416
        %v1691 = vxor.u32 %v1651, 2147516416
        %v1692 = vxor.u32 %v1652, 2147516416
        %v1693 = vxor.u32 %v1653, 2147516416
        %v1694 = vxor.u32 %v1654, 2147516416
        %v1695 = vxor.u32 %v1655, 2147516416
        %v1696 = vxor.u32 %v1656, 2147516416
        %v1697 = vxor.u32 %v1657, 2147516416
        %v1698 = vxor.u32 %v1658, 2147516416
        %v1699 = vxor.u32 %v1659, 2147516416
        %v1701 = vmul.bf16 %v1660, 1069105081
        %v1702 = vpow.bf16.pop %v1701
        %v1704 = vmul.bf16 %v1661, 1069105081
        %v1705 = vpow.bf16.pop %v1704
        %v1707 = vmul.bf16 %v1662, 1069105081
        %v1708 = vpow.bf16.pop %v1707
        %v1710 = vmul.bf16 %v1663, 1069105081
        %v1711 = vpow.bf16.pop %v1710
        %v1713 = vmul.bf16 %v1664, 1069105081
        %v1714 = vpow.bf16.pop %v1713
        %v1716 = vmul.bf16 %v1665, 1069105081
        %v1717 = vpow.bf16.pop %v1716
        %v1719 = vmul.bf16 %v1666, 1069105081
        %v1720 = vpow.bf16.pop %v1719
        %v1722 = vmul.bf16 %v1667, 1069105081
        %v1723 = vpow.bf16.pop %v1722
        %v1725 = vmul.bf16 %v1668, 1069105081
        %v1726 = vpow.bf16.pop %v1725
        %v1728 = vmul.bf16 %v1669, 1069105081
        %v1729 = vpow.bf16.pop %v1728
        %v1731 = vmul.bf16 %v1670, 1069105081
        %v1732 = vpow.bf16.pop %v1731
        %v1734 = vmul.bf16 %v1671, 1069105081
        %v1735 = vpow.bf16.pop %v1734
        %v1737 = vmul.bf16 %v1672, 1069105081
        %v1738 = vpow.bf16.pop %v1737
        %v1740 = vmul.bf16 %v1673, 1069105081
        %v1741 = vpow.bf16.pop %v1740
        %v1743 = vmul.bf16 %v1674, 1069105081
        %v1744 = vpow.bf16.pop %v1743
        %v1746 = vmul.bf16 %v1675, 1069105081
        %v1747 = vpow.bf16.pop %v1746
        %v1749 = vmul.bf16 %v1676, 1069105081
        %v1750 = vpow.bf16.pop %v1749
        %v1752 = vmul.bf16 %v1677, 1069105081
        %v1753 = vpow.bf16.pop %v1752
        %v1755 = vmul.bf16 %v1678, 1069105081
        %v1756 = vpow.bf16.pop %v1755
        %v1758 = vmul.bf16 %v1679, 1069105081
        %v1759 = vpow.bf16.pop %v1758
        %v1761 = vmul.bf16 %v1680, 1069105081
        %v1762 = vpow.bf16.pop %v1761
        %v1764 = vmul.bf16 %v1681, 1069105081
        %v1765 = vpow.bf16.pop %v1764
        %v1767 = vmul.bf16 %v1682, 1069105081
        %v1768 = vpow.bf16.pop %v1767
        %v1770 = vmul.bf16 %v1683, 1069105081
        %v1771 = vpow.bf16.pop %v1770
        %v1773 = vmul.bf16 %v1684, 1069105081
        %v1774 = vpow.bf16.pop %v1773
        %v1776 = vmul.bf16 %v1685, 1069105081
        %v1777 = vpow.bf16.pop %v1776
        %v1779 = vmul.bf16 %v1686, 1069105081
        %v1780 = vpow.bf16.pop %v1779
        %v1782 = vmul.bf16 %v1687, 1069105081
        %v1783 = vpow.bf16.pop %v1782
        %v1785 = vmul.bf16 %v1688, 1069105081
        %v1786 = vpow.bf16.pop %v1785
        %v1788 = vmul.bf16 %v1689, 1069105081
        %v1789 = vpow.bf16.pop %v1788
        %v1791 = vmul.bf16 %v1690, 1069105081
        %v1792 = vpow.bf16.pop %v1791
        %v1794 = vmul.bf16 %v1691, 1069105081
        %v1795 = vpow.bf16.pop %v1794
        %v1797 = vmul.bf16 %v1692, 1069105081
        %v1798 = vpow.bf16.pop %v1797
        %v1800 = vmul.bf16 %v1693, 1069105081
        %v1801 = vpow.bf16.pop %v1800
        %v1803 = vmul.bf16 %v1694, 1069105081
        %v1804 = vpow.bf16.pop %v1803
        %v1806 = vmul.bf16 %v1695, 1069105081
        %v1807 = vpow.bf16.pop %v1806
        %v1809 = vmul.bf16 %v1696, 1069105081
        %v1810 = vpow.bf16.pop %v1809
        %v1812 = vmul.bf16 %v1697, 1069105081
        %v1813 = vpow.bf16.pop %v1812
        %v1815 = vmul.bf16 %v1698, 1069105081
        %v1816 = vpow.bf16.pop %v1815
        %v1818 = vmul.bf16 %v1699, 1069105081
        %v1819 = vpow.bf16.pop %v1818
        %v1820 = vadd.bf16 %v1702, 1065369472
        %v1821 = vadd.bf16 %v1705, 1065369472
        %v1822 = vadd.bf16 %v1708, 1065369472
        %v1823 = vadd.bf16 %v1711, 1065369472
        %v1824 = vadd.bf16 %v1714, 1065369472
        %v1825 = vadd.bf16 %v1717, 1065369472
        %v1826 = vadd.bf16 %v1720, 1065369472
        %v1827 = vadd.bf16 %v1723, 1065369472
        %v1828 = vadd.bf16 %v1726, 1065369472
        %v1829 = vadd.bf16 %v1729, 1065369472
        %v1830 = vadd.bf16 %v1732, 1065369472
        %v1831 = vadd.bf16 %v1735, 1065369472
        %v1832 = vadd.bf16 %v1738, 1065369472
        %v1833 = vadd.bf16 %v1741, 1065369472
        %v1834 = vadd.bf16 %v1744, 1065369472
        %v1835 = vadd.bf16 %v1747, 1065369472
        %v1836 = vadd.bf16 %v1750, 1065369472
        %v1837 = vadd.bf16 %v1753, 1065369472
        %v1838 = vadd.bf16 %v1756, 1065369472
        %v1839 = vadd.bf16 %v1759, 1065369472
        %v1840 = vadd.bf16 %v1762, 1065369472
        %v1841 = vadd.bf16 %v1765, 1065369472
        %v1842 = vadd.bf16 %v1768, 1065369472
        %v1843 = vadd.bf16 %v1771, 1065369472
        %v1844 = vadd.bf16 %v1774, 1065369472
        %v1845 = vadd.bf16 %v1777, 1065369472
        %v1846 = vadd.bf16 %v1780, 1065369472
        %v1847 = vadd.bf16 %v1783, 1065369472
        %v1848 = vadd.bf16 %v1786, 1065369472
        %v1849 = vadd.bf16 %v1789, 1065369472
        %v1850 = vadd.bf16 %v1792, 1065369472
        %v1851 = vadd.bf16 %v1795, 1065369472
        %v1852 = vadd.bf16 %v1798, 1065369472
        %v1853 = vadd.bf16 %v1801, 1065369472
        %v1854 = vadd.bf16 %v1804, 1065369472
        %v1855 = vadd.bf16 %v1807, 1065369472
        %v1856 = vadd.bf16 %v1810, 1065369472
        %v1857 = vadd.bf16 %v1813, 1065369472
        %v1858 = vadd.bf16 %v1816, 1065369472
        %v1859 = vadd.bf16 %v1819, 1065369472
        %v1860 = vrcp.bf16.pop %v1820
        %v1861 = vmul.bf16 1065369472, %v1860
        %v1862 = vrcp.bf16.pop %v1821
        %v1863 = vmul.bf16 1065369472, %v1862
        %v1864 = vrcp.bf16.pop %v1822
        %v1865 = vmul.bf16 1065369472, %v1864
        %v1866 = vrcp.bf16.pop %v1823
        %v1867 = vmul.bf16 1065369472, %v1866
        %v1868 = vrcp.bf16.pop %v1824
        %v1869 = vmul.bf16 1065369472, %v1868
        %v1870 = vrcp.bf16.pop %v1825
        %v1871 = vmul.bf16 1065369472, %v1870
        %v1872 = vrcp.bf16.pop %v1826
        %v1873 = vmul.bf16 1065369472, %v1872
        %v1874 = vrcp.bf16.pop %v1827
        %v1875 = vmul.bf16 1065369472, %v1874
        %v1876 = vrcp.bf16.pop %v1828
        %v1877 = vmul.bf16 1065369472, %v1876
        %v1878 = vrcp.bf16.pop %v1829
        %v1879 = vmul.bf16 1065369472, %v1878
        %v1880 = vrcp.bf16.pop %v1830
        %v1881 = vmul.bf16 1065369472, %v1880
        %v1882 = vrcp.bf16.pop %v1831
        %v1883 = vmul.bf16 1065369472, %v1882
        %v1884 = vrcp.bf16.pop %v1832
        %v1885 = vmul.bf16 1065369472, %v1884
        %v1886 = vrcp.bf16.pop %v1833
        %v1887 = vmul.bf16 1065369472, %v1886
        %v1888 = vrcp.bf16.pop %v1834
        %v1889 = vmul.bf16 1065369472, %v1888
        %v1890 = vrcp.bf16.pop %v1835
        %v1891 = vmul.bf16 1065369472, %v1890
        %v1892 = vrcp.bf16.pop %v1836
        %v1893 = vmul.bf16 1065369472, %v1892
        %v1894 = vrcp.bf16.pop %v1837
        %v1895 = vmul.bf16 1065369472, %v1894
        %v1896 = vrcp.bf16.pop %v1838
        %v1897 = vmul.bf16 1065369472, %v1896
        %v1898 = vrcp.bf16.pop %v1839
        %v1899 = vmul.bf16 1065369472, %v1898
        %v1900 = vrcp.bf16.pop %v1840
        %v1901 = vmul.bf16 1065369472, %v1900
        %v1902 = vrcp.bf16.pop %v1841
        %v1903 = vmul.bf16 1065369472, %v1902
        %v1904 = vrcp.bf16.pop %v1842
        %v1905 = vmul.bf16 1065369472, %v1904
        %v1906 = vrcp.bf16.pop %v1843
        %v1907 = vmul.bf16 1065369472, %v1906
        %v1908 = vrcp.bf16.pop %v1844
        %v1909 = vmul.bf16 1065369472, %v1908
        %v1910 = vrcp.bf16.pop %v1845
        %v1911 = vmul.bf16 1065369472, %v1910
        %v1912 = vrcp.bf16.pop %v1846
        %v1913 = vmul.bf16 1065369472, %v1912
        %v1914 = vrcp.bf16.pop %v1847
        %v1915 = vmul.bf16 1065369472, %v1914
        %v1916 = vrcp.bf16.pop %v1848
        %v1917 = vmul.bf16 1065369472, %v1916
        %v1918 = vrcp.bf16.pop %v1849
        %v1919 = vmul.bf16 1065369472, %v1918
        %v1920 = vrcp.bf16.pop %v1850
        %v1921 = vmul.bf16 1065369472, %v1920
        %v1922 = vrcp.bf16.pop %v1851
        %v1923 = vmul.bf16 1065369472, %v1922
        %v1924 = vrcp.bf16.pop %v1852
        %v1925 = vmul.bf16 1065369472, %v1924
        %v1926 = vrcp.bf16.pop %v1853
        %v1927 = vmul.bf16 1065369472, %v1926
        %v1928 = vrcp.bf16.pop %v1854
        %v1929 = vmul.bf16 1065369472, %v1928
        %v1930 = vrcp.bf16.pop %v1855
        %v1931 = vmul.bf16 1065369472, %v1930
        %v1932 = vrcp.bf16.pop %v1856
        %v1933 = vmul.bf16 1065369472, %v1932
        %v1934 = vrcp.bf16.pop %v1857
        %v1935 = vmul.bf16 1065369472, %v1934
        %v1936 = vrcp.bf16.pop %v1858
        %v1937 = vmul.bf16 1065369472, %v1936
        %v1938 = vrcp.bf16.pop %v1859
        %v1939 = vmul.bf16 1065369472, %v1938
        %v1940 = vmul.bf16 %v1620, %v1861
        %v1941 = vmul.bf16 %v1621, %v1863
        %v1942 = vmul.bf16 %v1622, %v1865
        %v1943 = vmul.bf16 %v1623, %v1867
        %v1944 = vmul.bf16 %v1624, %v1869
        %v1945 = vmul.bf16 %v1625, %v1871
        %v1946 = vmul.bf16 %v1626, %v1873
        %v1947 = vmul.bf16 %v1627, %v1875
        %v1948 = vmul.bf16 %v1628, %v1877
        %v1949 = vmul.bf16 %v1629, %v1879
        %v1950 = vmul.bf16 %v1630, %v1881
        %v1951 = vmul.bf16 %v1631, %v1883
        %v1952 = vmul.bf16 %v1632, %v1885
        %v1953 = vmul.bf16 %v1633, %v1887
        %v1954 = vmul.bf16 %v1634, %v1889
        %v1955 = vmul.bf16 %v1635, %v1891
        %v1956 = vmul.bf16 %v1636, %v1893
        %v1957 = vmul.bf16 %v1637, %v1895
        %v1958 = vmul.bf16 %v1638, %v1897
        %v1959 = vmul.bf16 %v1639, %v1899
        %v1960 = vmul.bf16 %v1640, %v1901
        %v1961 = vmul.bf16 %v1641, %v1903
        %v1962 = vmul.bf16 %v1642, %v1905
        %v1963 = vmul.bf16 %v1643, %v1907
        %v1964 = vmul.bf16 %v1644, %v1909
        %v1965 = vmul.bf16 %v1645, %v1911
        %v1966 = vmul.bf16 %v1646, %v1913
        %v1967 = vmul.bf16 %v1647, %v1915
        %v1968 = vmul.bf16 %v1648, %v1917
        %v1969 = vmul.bf16 %v1649, %v1919
        %v1970 = vmul.bf16 %v1650, %v1921
        %v1971 = vmul.bf16 %v1651, %v1923
        %v1972 = vmul.bf16 %v1652, %v1925
        %v1973 = vmul.bf16 %v1653, %v1927
        %v1974 = vmul.bf16 %v1654, %v1929
        %v1975 = vmul.bf16 %v1655, %v1931
        %v1976 = vmul.bf16 %v1656, %v1933
        %v1977 = vmul.bf16 %v1657, %v1935
        %v1978 = vmul.bf16 %v1658, %v1937
        %v1979 = vmul.bf16 %v1659, %v1939
        %s1980 = smul.u32 %s32, 64
        %v1981 = vlaneseq
        %v1982 = vand.u32 %v1981, 127
        %v1983 = vstv %s1980
        %v1984 = vadd.s32 %v1983, %v1982
        %vm1985 = vcmp.lt.s32.totalorder %v1984, 64
        %v1986 = vsel %vm1985, 1, 0
        %v1987 = vcvt.s32.f32 %v1986
        %v1988 = vpack.c.bf16 %v1987, %v1987
        %v1989 = vld [vmem:[#allocation2] sm:$0xff]
        %v1990 = vld [vmem:[#allocation2 + $0x8] sm:$0x3]
        %vm1991 = vcmask 523264
        %v1993 = vsel %vm1991, %v1988, 0
        %1995 = vmatprep.subr.bf16.mxu0 %v1941
        %1996 = vmatpush1.bf16.msra.mxu0 %v1940
        %1997 = vmatprep.subr.bf16.mxu0 %v1951
        %1998 = vmatpush1.bf16.msra.mxu0 %v1950
        %1999 = vmatprep.subr.bf16.mxu0 %v1961
        %2000 = vmatpush1.bf16.msra.mxu0 %v1960
        %2001 = vmatprep.subr.bf16.mxu0 %v1971
        %2002 = vmatpush1.bf16.msra.mxu0 %v1970
        %2003 = vmatprep.subr.bf16.mxu0 0
        %2004 = vmatpush1.bf16.msra.mxu0 0
        %2005 = vmatprep.subr.bf16.mxu0 0
        %2006 = vmatpush1.bf16.msra.mxu0 0
        %2007 = vmatprep.subr.bf16.mxu0 0
        %2008 = vmatpush1.bf16.msra.mxu0 0
        %2009 = vmatprep.subr.bf16.mxu0 0
        %2010 = vmatpush1.bf16.msra.mxu0 0
        %2011 = vmatprep.subr.bf16.mxu0 0
        %2012 = vmatpush1.bf16.msra.mxu0 0
        %2013 = vmatprep.subr.bf16.mxu0 0
        %2014 = vmatpush1.bf16.msra.mxu0 0
        %2015 = vmatprep.subr.bf16.mxu0 0
        %2016 = vmatpush1.bf16.msra.mxu0 0
        %2017 = vmatprep.subr.bf16.mxu0 0
        %2018 = vmatpush1.bf16.msra.mxu0 0
        %2019 = vmatprep.subr.bf16.mxu0 0
        %2020 = vmatpush1.bf16.msra.mxu0 0
        %2021 = vmatprep.subr.bf16.mxu0 0
        %2022 = vmatpush1.bf16.msra.mxu0 0
        %2023 = vmatprep.subr.bf16.mxu0 0
        %2024 = vmatpush1.bf16.msra.mxu0 0
        %2025 = vmatprep.subr.bf16.mxu0 0
        %2026 = vmatpush1.bf16.msra.mxu0 0
        %2027 = vmatprep.mubr.bf16.mxu0 0
        %2028 = vmatmul.mubr.bf16.gmra.mrb[0].mxu0 %v1993
        %v2029 = vpop.f32.mrb[0].mxu0
        %v2030 = vadd.f32 0.0, %v2029
        %v2031 = vpop.f32.mrb[0].mxu0
        %v2032 = vadd.f32 0.0, %v2031
        %v2033 = vpop.f32.mrb[0].mxu0
        %v2034 = vpop.f32.mrb[0].mxu0
        %2035 = vdwg.mxu0
        %2036 = vmatprep.subr.bf16.mxu0 %v1943
        %2037 = vmatpush1.bf16.msra.mxu0 %v1942
        %2038 = vmatprep.subr.bf16.mxu0 %v1953
        %2039 = vmatpush1.bf16.msra.mxu0 %v1952
        %2040 = vmatprep.subr.bf16.mxu0 %v1963
        %2041 = vmatpush1.bf16.msra.mxu0 %v1962
        %2042 = vmatprep.subr.bf16.mxu0 %v1973
        %2043 = vmatpush1.bf16.msra.mxu0 %v1972
        %2044 = vmatprep.subr.bf16.mxu0 0
        %2045 = vmatpush1.bf16.msra.mxu0 0
        %2046 = vmatprep.subr.bf16.mxu0 0
        %2047 = vmatpush1.bf16.msra.mxu0 0
        %2048 = vmatprep.subr.bf16.mxu0 0
        %2049 = vmatpush1.bf16.msra.mxu0 0
        %2050 = vmatprep.subr.bf16.mxu0 0
        %2051 = vmatpush1.bf16.msra.mxu0 0
        %2052 = vmatprep.subr.bf16.mxu0 0
        %2053 = vmatpush1.bf16.msra.mxu0 0
        %2054 = vmatprep.subr.bf16.mxu0 0
        %2055 = vmatpush1.bf16.msra.mxu0 0
        %2056 = vmatprep.subr.bf16.mxu0 0
        %2057 = vmatpush1.bf16.msra.mxu0 0
        %2058 = vmatprep.subr.bf16.mxu0 0
        %2059 = vmatpush1.bf16.msra.mxu0 0
        %2060 = vmatprep.subr.bf16.mxu0 0
        %2061 = vmatpush1.bf16.msra.mxu0 0
        %2062 = vmatprep.subr.bf16.mxu0 0
        %2063 = vmatpush1.bf16.msra.mxu0 0
        %2064 = vmatprep.subr.bf16.mxu0 0
        %2065 = vmatpush1.bf16.msra.mxu0 0
        %2066 = vmatprep.subr.bf16.mxu0 0
        %2067 = vmatpush1.bf16.msra.mxu0 0
        %2068 = vmatprep.mubr.bf16.mxu0 0
        %2069 = vmatmul.mubr.bf16.gmra.mrb[0].mxu0 %v1993
        %v2070 = vpop.f32.mrb[0].mxu0
        %v2071 = vadd.f32 0.0, %v2070
        %v2072 = vpop.f32.mrb[0].mxu0
        %v2073 = vadd.f32 0.0, %v2072
        %v2074 = vpop.f32.mrb[0].mxu0
        %v2075 = vpop.f32.mrb[0].mxu0
        %2076 = vdwg.mxu0
        %2077 = vmatprep.subr.bf16.mxu0 %v1945
        %2078 = vmatpush1.bf16.msra.mxu0 %v1944
        %2079 = vmatprep.subr.bf16.mxu0 %v1955
        %2080 = vmatpush1.bf16.msra.mxu0 %v1954
        %2081 = vmatprep.subr.bf16.mxu0 %v1965
        %2082 = vmatpush1.bf16.msra.mxu0 %v1964
        %2083 = vmatprep.subr.bf16.mxu0 %v1975
        %2084 = vmatpush1.bf16.msra.mxu0 %v1974
        %2085 = vmatprep.subr.bf16.mxu0 0
        %2086 = vmatpush1.bf16.msra.mxu0 0
        %2087 = vmatprep.subr.bf16.mxu0 0
        %2088 = vmatpush1.bf16.msra.mxu0 0
        %2089 = vmatprep.subr.bf16.mxu0 0
        %2090 = vmatpush1.bf16.msra.mxu0 0
        %2091 = vmatprep.subr.bf16.mxu0 0
        %2092 = vmatpush1.bf16.msra.mxu0 0
        %2093 = vmatprep.subr.bf16.mxu0 0
        %2094 = vmatpush1.bf16.msra.mxu0 0
        %2095 = vmatprep.subr.bf16.mxu0 0
        %2096 = vmatpush1.bf16.msra.mxu0 0
        %2097 = vmatprep.subr.bf16.mxu0 0
        %2098 = vmatpush1.bf16.msra.mxu0 0
        %2099 = vmatprep.subr.bf16.mxu0 0
        %2100 = vmatpush1.bf16.msra.mxu0 0
        %2101 = vmatprep.subr.bf16.mxu0 0
        %2102 = vmatpush1.bf16.msra.mxu0 0
        %2103 = vmatprep.subr.bf16.mxu0 0
        %2104 = vmatpush1.bf16.msra.mxu0 0
        %2105 = vmatprep.subr.bf16.mxu0 0
        %2106 = vmatpush1.bf16.msra.mxu0 0
        %2107 = vmatprep.subr.bf16.mxu0 0
        %2108 = vmatpush1.bf16.msra.mxu0 0
        %2109 = vmatprep.mubr.bf16.mxu0 0
        %2110 = vmatmul.mubr.bf16.gmra.mrb[0].mxu0 %v1993
        %v2111 = vpop.f32.mrb[0].mxu0
        %v2112 = vadd.f32 0.0, %v2111
        %v2113 = vpop.f32.mrb[0].mxu0
        %v2114 = vadd.f32 0.0, %v2113
        %v2115 = vpop.f32.mrb[0].mxu0
        %v2116 = vpop.f32.mrb[0].mxu0
        %2117 = vdwg.mxu0
        %2118 = vmatprep.subr.bf16.mxu0 %v1947
        %2119 = vmatpush1.bf16.msra.mxu0 %v1946
        %2120 = vmatprep.subr.bf16.mxu0 %v1957
        %2121 = vmatpush1.bf16.msra.mxu0 %v1956
        %2122 = vmatprep.subr.bf16.mxu0 %v1967
        %2123 = vmatpush1.bf16.msra.mxu0 %v1966
        %2124 = vmatprep.subr.bf16.mxu0 %v1977
        %2125 = vmatpush1.bf16.msra.mxu0 %v1976
        %2126 = vmatprep.subr.bf16.mxu0 0
        %2127 = vmatpush1.bf16.msra.mxu0 0
        %2128 = vmatprep.subr.bf16.mxu0 0
        %2129 = vmatpush1.bf16.msra.mxu0 0
        %2130 = vmatprep.subr.bf16.mxu0 0
        %2131 = vmatpush1.bf16.msra.mxu0 0
        %2132 = vmatprep.subr.bf16.mxu0 0
        %2133 = vmatpush1.bf16.msra.mxu0 0
        %2134 = vmatprep.subr.bf16.mxu0 0
        %2135 = vmatpush1.bf16.msra.mxu0 0
        %2136 = vmatprep.subr.bf16.mxu0 0
        %2137 = vmatpush1.bf16.msra.mxu0 0
        %2138 = vmatprep.subr.bf16.mxu0 0
        %2139 = vmatpush1.bf16.msra.mxu0 0
        %2140 = vmatprep.subr.bf16.mxu0 0
        %2141 = vmatpush1.bf16.msra.mxu0 0
        %2142 = vmatprep.subr.bf16.mxu0 0
        %2143 = vmatpush1.bf16.msra.mxu0 0
        %2144 = vmatprep.subr.bf16.mxu0 0
        %2145 = vmatpush1.bf16.msra.mxu0 0
        %2146 = vmatprep.subr.bf16.mxu0 0
        %2147 = vmatpush1.bf16.msra.mxu0 0
        %2148 = vmatprep.subr.bf16.mxu0 0
        %2149 = vmatpush1.bf16.msra.mxu0 0
        %2150 = vmatprep.mubr.bf16.mxu0 0
        %2151 = vmatmul.mubr.bf16.gmra.mrb[0].mxu0 %v1993
        %v2152 = vpop.f32.mrb[0].mxu0
        %v2153 = vadd.f32 0.0, %v2152
        %v2154 = vpop.f32.mrb[0].mxu0
        %v2155 = vadd.f32 0.0, %v2154
        %v2156 = vpop.f32.mrb[0].mxu0
        %v2157 = vpop.f32.mrb[0].mxu0
        %2158 = vdwg.mxu0
        %2159 = vmatprep.subr.bf16.mxu0 %v1949
        %2160 = vmatpush1.bf16.msra.mxu0 %v1948
        %2161 = vmatprep.subr.bf16.mxu0 %v1959
        %2162 = vmatpush1.bf16.msra.mxu0 %v1958
        %2163 = vmatprep.subr.bf16.mxu0 %v1969
        %2164 = vmatpush1.bf16.msra.mxu0 %v1968
        %2165 = vmatprep.subr.bf16.mxu0 %v1979
        %2166 = vmatpush1.bf16.msra.mxu0 %v1978
        %2167 = vmatprep.subr.bf16.mxu0 0
        %2168 = vmatpush1.bf16.msra.mxu0 0
        %2169 = vmatprep.subr.bf16.mxu0 0
        %2170 = vmatpush1.bf16.msra.mxu0 0
        %2171 = vmatprep.subr.bf16.mxu0 0
        %2172 = vmatpush1.bf16.msra.mxu0 0
        %2173 = vmatprep.subr.bf16.mxu0 0
        %2174 = vmatpush1.bf16.msra.mxu0 0
        %2175 = vmatprep.subr.bf16.mxu0 0
        %2176 = vmatpush1.bf16.msra.mxu0 0
        %2177 = vmatprep.subr.bf16.mxu0 0
        %2178 = vmatpush1.bf16.msra.mxu0 0
        %2179 = vmatprep.subr.bf16.mxu0 0
        %2180 = vmatpush1.bf16.msra.mxu0 0
        %2181 = vmatprep.subr.bf16.mxu0 0
        %2182 = vmatpush1.bf16.msra.mxu0 0
        %2183 = vmatprep.subr.bf16.mxu0 0
        %2184 = vmatpush1.bf16.msra.mxu0 0
        %2185 = vmatprep.subr.bf16.mxu0 0
        %2186 = vmatpush1.bf16.msra.mxu0 0
        %2187 = vmatprep.subr.bf16.mxu0 0
        %2188 = vmatpush1.bf16.msra.mxu0 0
        %2189 = vmatprep.subr.bf16.mxu0 0
        %2190 = vmatpush1.bf16.msra.mxu0 0
        %2191 = vmatprep.mubr.bf16.mxu0 0
        %2192 = vmatmul.mubr.bf16.gmra.mrb[0].mxu0 %v1993
        %v2193 = vpop.f32.mrb[0].mxu0
        %v2194 = vadd.f32 0.0, %v2193
        %v2195 = vpop.f32.mrb[0].mxu0
        %v2196 = vadd.f32 0.0, %v2195
        %v2197 = vpop.f32.mrb[0].mxu0
        %v2198 = vpop.f32.mrb[0].mxu0
        %2199 = vdwg.mxu0
        %v2210 = vcombine.low %v2030, %v2032
        %v2211 = vcombine.low %v2071, %v2073
        %v2212 = vcombine.low %v2112, %v2114
        %v2213 = vcombine.low %v2153, %v2155
        %v2215 = vunpack.c.l.s4 1966171168
        %v2216 = vunpack.c.0.s8 %v2215
        %v2217 = vlaneseq
        %v2218 = vshrl.u32 %v2217, 7
        %v2219 = vsub.s32 %v2216, %v2218
        %v2220 = vrot.slane %v2210, %v2219
        %v2222 = vunpack.c.l.s4 1966171168
        %v2223 = vunpack.c.0.s8 %v2222
        %v2224 = vlaneseq
        %v2225 = vshrl.u32 %v2224, 7
        %v2226 = vsub.s32 %v2223, %v2225
        %v2227 = vrot.slane %v2211, %v2226
        %v2229 = vunpack.c.l.s4 1966171168
        %v2230 = vunpack.c.0.s8 %v2229
        %v2231 = vlaneseq
        %v2232 = vshrl.u32 %v2231, 7
        %v2233 = vsub.s32 %v2230, %v2232
        %v2234 = vrot.slane %v2212, %v2233
        %v2236 = vunpack.c.l.s4 1966171168
        %v2237 = vunpack.c.0.s8 %v2236
        %v2238 = vlaneseq
        %v2239 = vshrl.u32 %v2238, 7
        %v2240 = vsub.s32 %v2237, %v2239
        %v2241 = vrot.slane %v2213, %v2240
        %v2242 = vcombine.low %v2220, %v2227
        %v2243 = vcombine.low %v2234, %v2241
        %v2245 = vunpack.c.l.s4 1966171168
        %v2246 = vunpack.c.0.s8 %v2245
        %v2247 = vlaneseq
        %v2248 = vshrl.u32 %v2247, 7
        %v2249 = vsub.s32 %v2246, %v2248
        %v2250 = vrot.slane %v2242, %v2249
        %v2252 = vunpack.c.l.s4 1966171168
        %v2253 = vunpack.c.0.s8 %v2252
        %v2254 = vlaneseq
        %v2255 = vshrl.u32 %v2254, 7
        %v2256 = vsub.s32 %v2253, %v2255
        %v2257 = vrot.slane %v2243, %v2256
        %v2258 = vcombine.low %v2250, %v2257
        %v2259 = vcombine.low %v2194, %v2196
        %v2261 = vunpack.c.l.s4 1966171168
        %v2262 = vunpack.c.0.s8 %v2261
        %v2263 = vlaneseq
        %v2264 = vshrl.u32 %v2263, 7
        %v2265 = vsub.s32 %v2262, %v2264
        %v2266 = vrot.slane %v2259, %v2265
        %v2268 = vunpack.c.l.s4 1966171168
        %v2269 = vunpack.c.0.s8 %v2268
        %v2270 = vlaneseq
        %v2271 = vshrl.u32 %v2270, 7
        %v2272 = vsub.s32 %v2269, %v2271
        %v2273 = vrot.slane %v2266, %v2272
        %v2276 = vadd.f32 %v1989, %v2258
        %v2277 = vadd.f32 %v1990, %v2273
        %2278 = vst [vmem:[#allocation2] sm:$0xff] %v2276
        %v2279 = vlaneseq
        %vm2280 = vcmp.ge.s32.totalorder %v2279, 0
        %vm2281 = vcmp.lt.s32.totalorder %v2279, 256
        %vm2282 = vmand %vm2280, %vm2281
        %2283 = vst.msk [vmem:[#allocation2 + $0x8] sm:$0x3] %vm2282, %v2277
        // Predicated region
        $region81: #{double_image_model_forward.1} parent=47 // pred_check
          %p2284 = pneg %p396
        $region82: #{double_image_model_forward.1} parent=47 // pred_check_branch
          %2286 = sbr.rel (%p2284) target = $region84
        $region83: #{double_image_model_forward.1} parent=47 // pred_region
          %v2287 = vld [vmem:[#allocation2] sm:$0xff]
          %v2288 = vld [vmem:[#allocation2 + $0x8] sm:$0x3]
          %v2289 = vmul.f32 %v2287, 0.015625
          %v2290 = vmul.f32 %v2288, 0.015625
          %v2293 = vlaneseq
          %v2294 = vshrl.u32 %v2293, 7
          %v2295 = vsub.s32 0, %v2294
          %v2296 = vrot.slane %v2289, %v2295
          %v2297 = vlaneseq
          %v2298 = vshrl.u32 %v2297, 7
          %v2299 = vsub.s32 1, %v2298
          %v2300 = vrot.slane %v2289, %v2299
          %v2301 = vlaneseq
          %v2302 = vshrl.u32 %v2301, 7
          %v2303 = vsub.s32 2, %v2302
          %v2304 = vrot.slane %v2289, %v2303
          %v2305 = vlaneseq
          %v2306 = vshrl.u32 %v2305, 7
          %v2307 = vsub.s32 3, %v2306
          %v2308 = vrot.slane %v2289, %v2307
          %v2309 = vlaneseq
          %v2310 = vshrl.u32 %v2309, 7
          %v2311 = vsub.s32 4, %v2310
          %v2312 = vrot.slane %v2289, %v2311
          %v2313 = vlaneseq
          %v2314 = vshrl.u32 %v2313, 7
          %v2315 = vsub.s32 5, %v2314
          %v2316 = vrot.slane %v2289, %v2315
          %v2317 = vlaneseq
          %v2318 = vshrl.u32 %v2317, 7
          %v2319 = vsub.s32 6, %v2318
          %v2320 = vrot.slane %v2289, %v2319
          %v2321 = vlaneseq
          %v2322 = vshrl.u32 %v2321, 7
          %v2323 = vsub.s32 7, %v2322
          %v2324 = vrot.slane %v2289, %v2323
          %v2325 = vlaneseq
          %v2326 = vshrl.u32 %v2325, 7
          %v2327 = vsub.s32 0, %v2326
          %v2328 = vrot.slane %v2290, %v2327
          %v2329 = vlaneseq
          %v2330 = vshrl.u32 %v2329, 7
          %v2331 = vsub.s32 1, %v2330
          %v2332 = vrot.slane %v2290, %v2331
          %v2343 = vpack.c.bf16 %v2296, %v2296
          %v2344 = vpack.c.bf16 %v2300, %v2300
          %v2345 = vpack.c.bf16 %v2304, %v2304
          %v2346 = vpack.c.bf16 %v2308, %v2308
          %v2347 = vpack.c.bf16 %v2312, %v2312
          %v2348 = vpack.c.bf16 %v2316, %v2316
          %v2349 = vpack.c.bf16 %v2320, %v2320
          %v2350 = vpack.c.bf16 %v2324, %v2324
          %v2351 = vpack.c.bf16 %v2328, %v2328
          %v2352 = vpack.c.bf16 %v2332, %v2332
          %v2353 = vld [vmem:[#allocation12] sm:$0xf]
          %v2354 = vld [vmem:[#allocation12 + $0x4] sm:$0xf]
          %v2355 = vld [vmem:[#allocation12 + $0x8] sm:$0xf]
          %v2356 = vld [vmem:[#allocation12 + $0xc] sm:$0xf]
          %v2357 = vld [vmem:[#allocation12 + $0x10] sm:$0xf]
          %v2358 = vld [vmem:[#allocation12 + $0x14] sm:$0xf]
          %v2359 = vld [vmem:[#allocation12 + $0x18] sm:$0xf]
          %v2360 = vld [vmem:[#allocation12 + $0x1c] sm:$0xf]
          %v2361 = vld [vmem:[#allocation12 + $0x20] sm:$0xf]
          %v2362 = vld [vmem:[#allocation12 + $0x24] sm:$0xf]
          %v2363 = vld [vmem:[#allocation12 + $0x28] sm:$0xf]
          %v2364 = vld [vmem:[#allocation12 + $0x2c] sm:$0xf]
          %v2365 = vld [vmem:[#allocation12 + $0x30] sm:$0xf]
          %v2366 = vld [vmem:[#allocation12 + $0x34] sm:$0xf]
          %v2367 = vld [vmem:[#allocation12 + $0x38] sm:$0xf]
          %v2368 = vld [vmem:[#allocation12 + $0x3c] sm:$0xf]
          %v2369 = vld [vmem:[#allocation12 + $0x40] sm:$0xf]
          %v2370 = vld [vmem:[#allocation12 + $0x44] sm:$0xf]
          %v2371 = vld [vmem:[#allocation12 + $0x48] sm:$0xf]
          %v2372 = vld [vmem:[#allocation12 + $0x4c] sm:$0xf]
          %v2373 = vld [vmem:[#allocation12 + $0x50] sm:$0xf]
          %v2374 = vld [vmem:[#allocation12 + $0x54] sm:$0xf]
          %v2375 = vld [vmem:[#allocation12 + $0x58] sm:$0xf]
          %v2376 = vld [vmem:[#allocation12 + $0x5c] sm:$0xf]
          %v2377 = vld [vmem:[#allocation12 + $0x60] sm:$0xf]
          %v2378 = vld [vmem:[#allocation12 + $0x64] sm:$0xf]
          %v2379 = vld [vmem:[#allocation12 + $0x68] sm:$0xf]
          %v2380 = vld [vmem:[#allocation12 + $0x6c] sm:$0xf]
          %v2381 = vld [vmem:[#allocation12 + $0x70] sm:$0xf]
          %v2382 = vld [vmem:[#allocation12 + $0x74] sm:$0xf]
          %v2383 = vld [vmem:[#allocation12 + $0x78] sm:$0xf]
          %v2384 = vld [vmem:[#allocation12 + $0x7c] sm:$0xf]
          %v2385 = vld [vmem:[#allocation12 + $0x80] sm:$0xf]
          %v2386 = vld [vmem:[#allocation12 + $0x84] sm:$0xf]
          %v2387 = vld [vmem:[#allocation12 + $0x88] sm:$0xf]
          %v2388 = vld [vmem:[#allocation12 + $0x8c] sm:$0xf]
          %v2389 = vld [vmem:[#allocation12 + $0x90] sm:$0xf]
          %v2390 = vld [vmem:[#allocation12 + $0x94] sm:$0xf]
          %v2391 = vld [vmem:[#allocation12 + $0x98] sm:$0xf]
          %v2392 = vld [vmem:[#allocation12 + $0x9c] sm:$0xf]
          %v2393 = vld [vmem:[#allocation12 + $0xa0] sm:$0xf]
          %v2394 = vld [vmem:[#allocation12 + $0xa4] sm:$0xf]
          %v2395 = vld [vmem:[#allocation12 + $0xa8] sm:$0xf]
          %v2396 = vld [vmem:[#allocation12 + $0xac] sm:$0xf]
          %v2397 = vld [vmem:[#allocation12 + $0xb0] sm:$0xf]
          %v2398 = vld [vmem:[#allocation12 + $0xb4] sm:$0xf]
          %v2399 = vld [vmem:[#allocation12 + $0xb8] sm:$0xf]
          %v2400 = vld [vmem:[#allocation12 + $0xbc] sm:$0xf]
          %v2401 = vld [vmem:[#allocation12 + $0xc0] sm:$0xf]
          %v2402 = vld [vmem:[#allocation12 + $0xc4] sm:$0xf]
          %v2403 = vld [vmem:[#allocation12 + $0xc8] sm:$0xf]
          %v2404 = vld [vmem:[#allocation12 + $0xcc] sm:$0xf]
          %v2405 = vld [vmem:[#allocation12 + $0xd0] sm:$0xf]
          %v2406 = vld [vmem:[#allocation12 + $0xd4] sm:$0xf]
          %v2407 = vld [vmem:[#allocation12 + $0xd8] sm:$0xf]
          %v2408 = vld [vmem:[#allocation12 + $0xdc] sm:$0xf]
          %v2409 = vld [vmem:[#allocation12 + $0xe0] sm:$0xf]
          %v2410 = vld [vmem:[#allocation12 + $0xe4] sm:$0xf]
          %v2411 = vld [vmem:[#allocation12 + $0xe8] sm:$0xf]
          %v2412 = vld [vmem:[#allocation12 + $0xec] sm:$0xf]
          %v2413 = vld [vmem:[#allocation12 + $0xf0] sm:$0xf]
          %v2414 = vld [vmem:[#allocation12 + $0xf4] sm:$0xf]
          %v2415 = vld [vmem:[#allocation12 + $0xf8] sm:$0xf]
          %v2416 = vld [vmem:[#allocation12 + $0xfc] sm:$0xf]
          %v2417 = vld [vmem:[#allocation12 + $0x100] sm:$0xf]
          %v2418 = vld [vmem:[#allocation12 + $0x104] sm:$0xf]
          %v2419 = vld [vmem:[#allocation12 + $0x108] sm:$0xf]
          %v2420 = vld [vmem:[#allocation12 + $0x10c] sm:$0xf]
          %v2421 = vld [vmem:[#allocation12 + $0x110] sm:$0xf]
          %v2422 = vld [vmem:[#allocation12 + $0x114] sm:$0xf]
          %v2423 = vld [vmem:[#allocation12 + $0x118] sm:$0xf]
          %v2424 = vld [vmem:[#allocation12 + $0x11c] sm:$0xf]
          %v2425 = vld [vmem:[#allocation12 + $0x120] sm:$0xf]
          %v2426 = vld [vmem:[#allocation12 + $0x124] sm:$0xf]
          %v2427 = vld [vmem:[#allocation12 + $0x128] sm:$0xf]
          %v2428 = vld [vmem:[#allocation12 + $0x12c] sm:$0xf]
          %v2429 = vld [vmem:[#allocation12 + $0x130] sm:$0xf]
          %v2430 = vld [vmem:[#allocation12 + $0x134] sm:$0xf]
          %v2431 = vld [vmem:[#allocation12 + $0x138] sm:$0xf]
          %v2432 = vld [vmem:[#allocation12 + $0x13c] sm:$0xf]
          %v2433 = vld [vmem:[#allocation12 + $0x140] sm:$0xf]
          %v2434 = vld [vmem:[#allocation12 + $0x144] sm:$0xf]
          %v2435 = vld [vmem:[#allocation12 + $0x148] sm:$0xf]
          %v2436 = vld [vmem:[#allocation12 + $0x14c] sm:$0xf]
          %v2437 = vld [vmem:[#allocation12 + $0x150] sm:$0xf]
          %v2438 = vld [vmem:[#allocation12 + $0x154] sm:$0xf]
          %v2439 = vld [vmem:[#allocation12 + $0x158] sm:$0xf]
          %v2440 = vld [vmem:[#allocation12 + $0x15c] sm:$0xf]
          %v2441 = vld [vmem:[#allocation12 + $0x160] sm:$0xf]
          %v2442 = vld [vmem:[#allocation12 + $0x164] sm:$0xf]
          %v2443 = vld [vmem:[#allocation12 + $0x168] sm:$0xf]
          %v2444 = vld [vmem:[#allocation12 + $0x16c] sm:$0xf]
          %v2445 = vld [vmem:[#allocation12 + $0x170] sm:$0xf]
          %v2446 = vld [vmem:[#allocation12 + $0x174] sm:$0xf]
          %v2447 = vld [vmem:[#allocation12 + $0x178] sm:$0xf]
          %v2448 = vld [vmem:[#allocation12 + $0x17c] sm:$0xf]
          %v2449 = vld [vmem:[#allocation12 + $0x180] sm:$0xf]
          %v2450 = vld [vmem:[#allocation12 + $0x184] sm:$0xf]
          %v2451 = vld [vmem:[#allocation12 + $0x188] sm:$0xf]
          %v2452 = vld [vmem:[#allocation12 + $0x18c] sm:$0xf]
          %v2453 = vld [vmem:[#allocation12 + $0x190] sm:$0xf]
          %v2454 = vld [vmem:[#allocation12 + $0x194] sm:$0xf]
          %v2455 = vld [vmem:[#allocation12 + $0x198] sm:$0xf]
          %v2456 = vld [vmem:[#allocation12 + $0x19c] sm:$0xf]
          %v2457 = vld [vmem:[#allocation12 + $0x1a0] sm:$0xf]
          %v2458 = vld [vmem:[#allocation12 + $0x1a4] sm:$0xf]
          %v2459 = vld [vmem:[#allocation12 + $0x1a8] sm:$0xf]
          %v2460 = vld [vmem:[#allocation12 + $0x1ac] sm:$0xf]
          %v2461 = vld [vmem:[#allocation12 + $0x1b0] sm:$0xf]
          %v2462 = vld [vmem:[#allocation12 + $0x1b4] sm:$0xf]
          %v2463 = vld [vmem:[#allocation12 + $0x1b8] sm:$0xf]
          %v2464 = vld [vmem:[#allocation12 + $0x1bc] sm:$0xf]
          %v2465 = vld [vmem:[#allocation12 + $0x1c0] sm:$0xf]
          %v2466 = vld [vmem:[#allocation12 + $0x1c4] sm:$0xf]
          %v2467 = vld [vmem:[#allocation12 + $0x1c8] sm:$0xf]
          %v2468 = vld [vmem:[#allocation12 + $0x1cc] sm:$0xf]
          %v2469 = vld [vmem:[#allocation12 + $0x1d0] sm:$0xf]
          %v2470 = vld [vmem:[#allocation12 + $0x1d4] sm:$0xf]
          %v2471 = vld [vmem:[#allocation12 + $0x1d8] sm:$0xf]
          %v2472 = vld [vmem:[#allocation12 + $0x1dc] sm:$0xf]
          %v2473 = vld [vmem:[#allocation12 + $0x1e0] sm:$0xf]
          %v2474 = vld [vmem:[#allocation12 + $0x1e4] sm:$0xf]
          %v2475 = vld [vmem:[#allocation12 + $0x1e8] sm:$0xf]
          %v2476 = vld [vmem:[#allocation12 + $0x1ec] sm:$0xf]
          %v2477 = vld [vmem:[#allocation12 + $0x1f0] sm:$0xf]
          %v2478 = vld [vmem:[#allocation12 + $0x1f4] sm:$0xf]
          %v2479 = vld [vmem:[#allocation12 + $0x1f8] sm:$0xf]
          %v2480 = vld [vmem:[#allocation12 + $0x1fc] sm:$0xf]
          %v2481 = vld [vmem:[#allocation12 + $0x200] sm:$0xf]
          %v2482 = vld [vmem:[#allocation12 + $0x204] sm:$0xf]
          %v2483 = vld [vmem:[#allocation12 + $0x208] sm:$0xf]
          %v2484 = vld [vmem:[#allocation12 + $0x20c] sm:$0xf]
          %v2485 = vld [vmem:[#allocation12 + $0x210] sm:$0xf]
          %v2486 = vld [vmem:[#allocation12 + $0x214] sm:$0xf]
          %v2487 = vld [vmem:[#allocation12 + $0x218] sm:$0xf]
          %v2488 = vld [vmem:[#allocation12 + $0x21c] sm:$0xf]
          %v2489 = vld [vmem:[#allocation12 + $0x220] sm:$0xf]
          %v2490 = vld [vmem:[#allocation12 + $0x224] sm:$0xf]
          %v2491 = vld [vmem:[#allocation12 + $0x228] sm:$0xf]
          %v2492 = vld [vmem:[#allocation12 + $0x22c] sm:$0xf]
          %v2493 = vld [vmem:[#allocation12 + $0x230] sm:$0xf]
          %v2494 = vld [vmem:[#allocation12 + $0x234] sm:$0xf]
          %v2495 = vld [vmem:[#allocation12 + $0x238] sm:$0xf]
          %v2496 = vld [vmem:[#allocation12 + $0x23c] sm:$0xf]
          %v2497 = vld [vmem:[#allocation12 + $0x240] sm:$0xf]
          %v2498 = vld [vmem:[#allocation12 + $0x244] sm:$0xf]
          %v2499 = vld [vmem:[#allocation12 + $0x248] sm:$0xf]
          %v2500 = vld [vmem:[#allocation12 + $0x24c] sm:$0xf]
          %v2501 = vld [vmem:[#allocation12 + $0x250] sm:$0xf]
          %v2502 = vld [vmem:[#allocation12 + $0x254] sm:$0xf]
          %v2503 = vld [vmem:[#allocation12 + $0x258] sm:$0xf]
          %v2504 = vld [vmem:[#allocation12 + $0x25c] sm:$0xf]
          %v2505 = vld [vmem:[#allocation12 + $0x260] sm:$0xf]
          %v2506 = vld [vmem:[#allocation12 + $0x264] sm:$0xf]
          %v2507 = vld [vmem:[#allocation12 + $0x268] sm:$0xf]
          %v2508 = vld [vmem:[#allocation12 + $0x26c] sm:$0xf]
          %v2509 = vld [vmem:[#allocation12 + $0x270] sm:$0xf]
          %v2510 = vld [vmem:[#allocation12 + $0x274] sm:$0xf]
          %v2511 = vld [vmem:[#allocation12 + $0x278] sm:$0xf]
          %v2512 = vld [vmem:[#allocation12 + $0x27c] sm:$0xf]
          %v2513 = vld [vmem:[#allocation14] sm:$0x1]
          %v2674 = vunpack.c.l.b16 %v2353
          %v2675 = vunpack.c.l.b16 %v2354
          %v2676 = vunpack.c.l.b16 %v2355
          %v2677 = vunpack.c.l.b16 %v2356
          %v2678 = vunpack.c.l.b16 %v2357
          %v2679 = vunpack.c.l.b16 %v2358
          %v2680 = vunpack.c.l.b16 %v2359
          %v2681 = vunpack.c.l.b16 %v2360
          %v2682 = vunpack.c.l.b16 %v2361
          %v2683 = vunpack.c.l.b16 %v2362
          %v2684 = vunpack.c.l.b16 %v2363
          %v2685 = vunpack.c.l.b16 %v2364
          %v2686 = vunpack.c.l.b16 %v2365
          %v2687 = vunpack.c.l.b16 %v2366
          %v2688 = vunpack.c.l.b16 %v2367
          %v2689 = vunpack.c.l.b16 %v2368
          %v2690 = vunpack.c.l.b16 %v2369
          %v2691 = vunpack.c.l.b16 %v2370
          %v2692 = vunpack.c.l.b16 %v2371
          %v2693 = vunpack.c.l.b16 %v2372
          %v2694 = vunpack.c.l.b16 %v2373
          %v2695 = vunpack.c.l.b16 %v2374
          %v2696 = vunpack.c.l.b16 %v2375
          %v2697 = vunpack.c.l.b16 %v2376
          %v2698 = vunpack.c.l.b16 %v2377
          %v2699 = vunpack.c.l.b16 %v2378
          %v2700 = vunpack.c.l.b16 %v2379
          %v2701 = vunpack.c.l.b16 %v2380
          %v2702 = vunpack.c.l.b16 %v2381
          %v2703 = vunpack.c.l.b16 %v2382
          %v2704 = vunpack.c.l.b16 %v2383
          %v2705 = vunpack.c.l.b16 %v2384
          %v2706 = vunpack.c.l.b16 %v2385
          %v2707 = vunpack.c.l.b16 %v2386
          %v2708 = vunpack.c.l.b16 %v2387
          %v2709 = vunpack.c.l.b16 %v2388
          %v2710 = vunpack.c.l.b16 %v2389
          %v2711 = vunpack.c.l.b16 %v2390
          %v2712 = vunpack.c.l.b16 %v2391
          %v2713 = vunpack.c.l.b16 %v2392
          %v2714 = vunpack.c.l.b16 %v2393
          %v2715 = vunpack.c.l.b16 %v2394
          %v2716 = vunpack.c.l.b16 %v2395
          %v2717 = vunpack.c.l.b16 %v2396
          %v2718 = vunpack.c.l.b16 %v2397
          %v2719 = vunpack.c.l.b16 %v2398
          %v2720 = vunpack.c.l.b16 %v2399
          %v2721 = vunpack.c.l.b16 %v2400
          %v2722 = vunpack.c.l.b16 %v2401
          %v2723 = vunpack.c.l.b16 %v2402
          %v2724 = vunpack.c.l.b16 %v2403
          %v2725 = vunpack.c.l.b16 %v2404
          %v2726 = vunpack.c.l.b16 %v2405
          %v2727 = vunpack.c.l.b16 %v2406
          %v2728 = vunpack.c.l.b16 %v2407
          %v2729 = vunpack.c.l.b16 %v2408
          %v2730 = vunpack.c.l.b16 %v2409
          %v2731 = vunpack.c.l.b16 %v2410
          %v2732 = vunpack.c.l.b16 %v2411
          %v2733 = vunpack.c.l.b16 %v2412
          %v2734 = vunpack.c.l.b16 %v2413
          %v2735 = vunpack.c.l.b16 %v2414
          %v2736 = vunpack.c.l.b16 %v2415
          %v2737 = vunpack.c.l.b16 %v2416
          %v2738 = vunpack.c.l.b16 %v2417
          %v2739 = vunpack.c.l.b16 %v2418
          %v2740 = vunpack.c.l.b16 %v2419
          %v2741 = vunpack.c.l.b16 %v2420
          %v2742 = vunpack.c.l.b16 %v2421
          %v2743 = vunpack.c.l.b16 %v2422
          %v2744 = vunpack.c.l.b16 %v2423
          %v2745 = vunpack.c.l.b16 %v2424
          %v2746 = vunpack.c.l.b16 %v2425
          %v2747 = vunpack.c.l.b16 %v2426
          %v2748 = vunpack.c.l.b16 %v2427
          %v2749 = vunpack.c.l.b16 %v2428
          %v2750 = vunpack.c.l.b16 %v2429
          %v2751 = vunpack.c.l.b16 %v2430
          %v2752 = vunpack.c.l.b16 %v2431
          %v2753 = vunpack.c.l.b16 %v2432
          %v2754 = vunpack.c.l.b16 %v2433
          %v2755 = vunpack.c.l.b16 %v2434
          %v2756 = vunpack.c.l.b16 %v2435
          %v2757 = vunpack.c.l.b16 %v2436
          %v2758 = vunpack.c.l.b16 %v2437
          %v2759 = vunpack.c.l.b16 %v2438
          %v2760 = vunpack.c.l.b16 %v2439
          %v2761 = vunpack.c.l.b16 %v2440
          %v2762 = vunpack.c.l.b16 %v2441
          %v2763 = vunpack.c.l.b16 %v2442
          %v2764 = vunpack.c.l.b16 %v2443
          %v2765 = vunpack.c.l.b16 %v2444
          %v2766 = vunpack.c.l.b16 %v2445
          %v2767 = vunpack.c.l.b16 %v2446
          %v2768 = vunpack.c.l.b16 %v2447
          %v2769 = vunpack.c.l.b16 %v2448
          %v2770 = vunpack.c.l.b16 %v2449
          %v2771 = vunpack.c.l.b16 %v2450
          %v2772 = vunpack.c.l.b16 %v2451
          %v2773 = vunpack.c.l.b16 %v2452
          %v2774 = vunpack.c.l.b16 %v2453
          %v2775 = vunpack.c.l.b16 %v2454
          %v2776 = vunpack.c.l.b16 %v2455
          %v2777 = vunpack.c.l.b16 %v2456
          %v2778 = vunpack.c.l.b16 %v2457
          %v2779 = vunpack.c.l.b16 %v2458
          %v2780 = vunpack.c.l.b16 %v2459
          %v2781 = vunpack.c.l.b16 %v2460
          %v2782 = vunpack.c.l.b16 %v2461
          %v2783 = vunpack.c.l.b16 %v2462
          %v2784 = vunpack.c.l.b16 %v2463
          %v2785 = vunpack.c.l.b16 %v2464
          %v2786 = vunpack.c.l.b16 %v2465
          %v2787 = vunpack.c.l.b16 %v2466
          %v2788 = vunpack.c.l.b16 %v2467
          %v2789 = vunpack.c.l.b16 %v2468
          %v2790 = vunpack.c.l.b16 %v2469
          %v2791 = vunpack.c.l.b16 %v2470
          %v2792 = vunpack.c.l.b16 %v2471
          %v2793 = vunpack.c.l.b16 %v2472
          %v2794 = vunpack.c.l.b16 %v2473
          %v2795 = vunpack.c.l.b16 %v2474
          %v2796 = vunpack.c.l.b16 %v2475
          %v2797 = vunpack.c.l.b16 %v2476
          %v2798 = vunpack.c.l.b16 %v2477
          %v2799 = vunpack.c.l.b16 %v2478
          %v2800 = vunpack.c.l.b16 %v2479
          %v2801 = vunpack.c.l.b16 %v2480
          %v2802 = vunpack.c.l.b16 %v2481
          %v2803 = vunpack.c.l.b16 %v2482
          %v2804 = vunpack.c.l.b16 %v2483
          %v2805 = vunpack.c.l.b16 %v2484
          %v2806 = vunpack.c.l.b16 %v2485
          %v2807 = vunpack.c.l.b16 %v2486
          %v2808 = vunpack.c.l.b16 %v2487
          %v2809 = vunpack.c.l.b16 %v2488
          %v2810 = vunpack.c.l.b16 %v2489
          %v2811 = vunpack.c.l.b16 %v2490
          %v2812 = vunpack.c.l.b16 %v2491
          %v2813 = vunpack.c.l.b16 %v2492
          %v2814 = vunpack.c.l.b16 %v2493
          %v2815 = vunpack.c.l.b16 %v2494
          %v2816 = vunpack.c.l.b16 %v2495
          %v2817 = vunpack.c.l.b16 %v2496
          %v2818 = vunpack.c.l.b16 %v2497
          %v2819 = vunpack.c.l.b16 %v2498
          %v2820 = vunpack.c.l.b16 %v2499
          %v2821 = vunpack.c.l.b16 %v2500
          %v2822 = vunpack.c.l.b16 %v2501
          %v2823 = vunpack.c.l.b16 %v2502
          %v2824 = vunpack.c.l.b16 %v2503
          %v2825 = vunpack.c.l.b16 %v2504
          %v2826 = vunpack.c.l.b16 %v2505
          %v2827 = vunpack.c.l.b16 %v2506
          %v2828 = vunpack.c.l.b16 %v2507
          %v2829 = vunpack.c.l.b16 %v2508
          %v2830 = vunpack.c.l.b16 %v2509
          %v2831 = vunpack.c.l.b16 %v2510
          %v2832 = vunpack.c.l.b16 %v2511
          %v2833 = vunpack.c.l.b16 %v2512
          %v2834 = vpack.c.b16 %v2675, %v2674
          %v2835 = vpack.c.b16 %v2677, %v2676
          %v2836 = vpack.c.b16 %v2679, %v2678
          %v2837 = vpack.c.b16 %v2681, %v2680
          %v2838 = vpack.c.b16 %v2683, %v2682
          %v2839 = vpack.c.b16 %v2685, %v2684
          %v2840 = vpack.c.b16 %v2687, %v2686
          %v2841 = vpack.c.b16 %v2689, %v2688
          %v2842 = vpack.c.b16 %v2691, %v2690
          %v2843 = vpack.c.b16 %v2693, %v2692
          %v2844 = vpack.c.b16 %v2695, %v2694
          %v2845 = vpack.c.b16 %v2697, %v2696
          %v2846 = vpack.c.b16 %v2699, %v2698
          %v2847 = vpack.c.b16 %v2701, %v2700
          %v2848 = vpack.c.b16 %v2703, %v2702
          %v2849 = vpack.c.b16 %v2705, %v2704
          %v2850 = vpack.c.b16 %v2707, %v2706
          %v2851 = vpack.c.b16 %v2709, %v2708
          %v2852 = vpack.c.b16 %v2711, %v2710
          %v2853 = vpack.c.b16 %v2713, %v2712
          %v2854 = vpack.c.b16 %v2715, %v2714
          %v2855 = vpack.c.b16 %v2717, %v2716
          %v2856 = vpack.c.b16 %v2719, %v2718
          %v2857 = vpack.c.b16 %v2721, %v2720
          %v2858 = vpack.c.b16 %v2723, %v2722
          %v2859 = vpack.c.b16 %v2725, %v2724
          %v2860 = vpack.c.b16 %v2727, %v2726
          %v2861 = vpack.c.b16 %v2729, %v2728
          %v2862 = vpack.c.b16 %v2731, %v2730
          %v2863 = vpack.c.b16 %v2733, %v2732
          %v2864 = vpack.c.b16 %v2735, %v2734
          %v2865 = vpack.c.b16 %v2737, %v2736
          %v2866 = vpack.c.b16 %v2739, %v2738
          %v2867 = vpack.c.b16 %v2741, %v2740
          %v2868 = vpack.c.b16 %v2743, %v2742
          %v2869 = vpack.c.b16 %v2745, %v2744
          %v2870 = vpack.c.b16 %v2747, %v2746
          %v2871 = vpack.c.b16 %v2749, %v2748
          %v2872 = vpack.c.b16 %v2751, %v2750
          %v2873 = vpack.c.b16 %v2753, %v2752
          %v2874 = vpack.c.b16 %v2755, %v2754
          %v2875 = vpack.c.b16 %v2757, %v2756
          %v2876 = vpack.c.b16 %v2759, %v2758
          %v2877 = vpack.c.b16 %v2761, %v2760
          %v2878 = vpack.c.b16 %v2763, %v2762
          %v2879 = vpack.c.b16 %v2765, %v2764
          %v2880 = vpack.c.b16 %v2767, %v2766
          %v2881 = vpack.c.b16 %v2769, %v2768
          %v2882 = vpack.c.b16 %v2771, %v2770
          %v2883 = vpack.c.b16 %v2773, %v2772
          %v2884 = vpack.c.b16 %v2775, %v2774
          %v2885 = vpack.c.b16 %v2777, %v2776
          %v2886 = vpack.c.b16 %v2779, %v2778
          %v2887 = vpack.c.b16 %v2781, %v2780
          %v2888 = vpack.c.b16 %v2783, %v2782
          %v2889 = vpack.c.b16 %v2785, %v2784
          %v2890 = vpack.c.b16 %v2787, %v2786
          %v2891 = vpack.c.b16 %v2789, %v2788
          %v2892 = vpack.c.b16 %v2791, %v2790
          %v2893 = vpack.c.b16 %v2793, %v2792
          %v2894 = vpack.c.b16 %v2795, %v2794
          %v2895 = vpack.c.b16 %v2797, %v2796
          %v2896 = vpack.c.b16 %v2799, %v2798
          %v2897 = vpack.c.b16 %v2801, %v2800
          %v2898 = vpack.c.b16 %v2803, %v2802
          %v2899 = vpack.c.b16 %v2805, %v2804
          %v2900 = vpack.c.b16 %v2807, %v2806
          %v2901 = vpack.c.b16 %v2809, %v2808
          %v2902 = vpack.c.b16 %v2811, %v2810
          %v2903 = vpack.c.b16 %v2813, %v2812
          %v2904 = vpack.c.b16 %v2815, %v2814
          %v2905 = vpack.c.b16 %v2817, %v2816
          %v2906 = vpack.c.b16 %v2819, %v2818
          %v2907 = vpack.c.b16 %v2821, %v2820
          %v2908 = vpack.c.b16 %v2823, %v2822
          %v2909 = vpack.c.b16 %v2825, %v2824
          %v2910 = vpack.c.b16 %v2827, %v2826
          %v2911 = vpack.c.b16 %v2829, %v2828
          %v2912 = vpack.c.b16 %v2831, %v2830
          %v2913 = vpack.c.b16 %v2833, %v2832
          %2994 = vmatprep.subr.bf16.mxu0 0
          %2995 = vmatpush1.bf16.msra.mxu0 %v2834
          %2996 = vmatprep.subr.bf16.mxu0 0
          %2997 = vmatpush1.bf16.msra.mxu0 %v2835
          %2998 = vmatprep.subr.bf16.mxu0 0
          %2999 = vmatpush1.bf16.msra.mxu0 %v2836
          %3000 = vmatprep.subr.bf16.mxu0 0
          %3001 = vmatpush1.bf16.msra.mxu0 %v2837
          %3002 = vmatprep.subr.bf16.mxu0 0
          %3003 = vmatpush1.bf16.msra.mxu0 %v2838
          %3004 = vmatprep.subr.bf16.mxu0 0
          %3005 = vmatpush1.bf16.msra.mxu0 %v2839
          %3006 = vmatprep.subr.bf16.mxu0 0
          %3007 = vmatpush1.bf16.msra.mxu0 %v2840
          %3008 = vmatprep.subr.bf16.mxu0 0
          %3009 = vmatpush1.bf16.msra.mxu0 %v2841
          %3010 = vmatprep.subr.bf16.mxu0 0
          %3011 = vmatpush1.bf16.msra.mxu0 %v2842
          %3012 = vmatprep.subr.bf16.mxu0 0
          %3013 = vmatpush1.bf16.msra.mxu0 %v2843
          %3014 = vmatprep.subr.bf16.mxu0 0
          %3015 = vmatpush1.bf16.msra.mxu0 %v2844
          %3016 = vmatprep.subr.bf16.mxu0 0
          %3017 = vmatpush1.bf16.msra.mxu0 %v2845
          %3018 = vmatprep.subr.bf16.mxu0 0
          %3019 = vmatpush1.bf16.msra.mxu0 %v2846
          %3020 = vmatprep.subr.bf16.mxu0 0
          %3021 = vmatpush1.bf16.msra.mxu0 %v2847
          %3022 = vmatprep.subr.bf16.mxu0 0
          %3023 = vmatpush1.bf16.msra.mxu0 %v2848
          %3024 = vmatprep.subr.bf16.mxu0 0
          %3025 = vmatpush1.bf16.msra.mxu0 %v2849
          %3026 = vmatprep.mubr.bf16.mxu0 %v2344
          %3027 = vmatmul.mubr.bf16.gmra.mrb[0].mxu0 %v2343
          %v3028 = vpop.f32.mrb[0].mxu0
          %v3029 = vadd.f32 %v2513, %v3028
          %v3030 = vpop.f32.mrb[0].mxu0
          %v3031 = vpop.f32.mrb[0].mxu0
          %v3032 = vpop.f32.mrb[0].mxu0
          %3033 = vdwg.mxu0
          %3034 = vmatprep.subr.bf16.mxu0 0
          %3035 = vmatpush1.bf16.msra.mxu0 %v2850
          %3036 = vmatprep.subr.bf16.mxu0 0
          %3037 = vmatpush1.bf16.msra.mxu0 %v2851
          %3038 = vmatprep.subr.bf16.mxu0 0
          %3039 = vmatpush1.bf16.msra.mxu0 %v2852
          %3040 = vmatprep.subr.bf16.mxu0 0
          %3041 = vmatpush1.bf16.msra.mxu0 %v2853
          %3042 = vmatprep.subr.bf16.mxu0 0
          %3043 = vmatpush1.bf16.msra.mxu0 %v2854
          %3044 = vmatprep.subr.bf16.mxu0 0
          %3045 = vmatpush1.bf16.msra.mxu0 %v2855
          %3046 = vmatprep.subr.bf16.mxu0 0
          %3047 = vmatpush1.bf16.msra.mxu0 %v2856
          %3048 = vmatprep.subr.bf16.mxu0 0
          %3049 = vmatpush1.bf16.msra.mxu0 %v2857
          %3050 = vmatprep.subr.bf16.mxu0 0
          %3051 = vmatpush1.bf16.msra.mxu0 %v2858
          %3052 = vmatprep.subr.bf16.mxu0 0
          %3053 = vmatpush1.bf16.msra.mxu0 %v2859
          %3054 = vmatprep.subr.bf16.mxu0 0
          %3055 = vmatpush1.bf16.msra.mxu0 %v2860
          %3056 = vmatprep.subr.bf16.mxu0 0
          %3057 = vmatpush1.bf16.msra.mxu0 %v2861
          %3058 = vmatprep.subr.bf16.mxu0 0
          %3059 = vmatpush1.bf16.msra.mxu0 %v2862
          %3060 = vmatprep.subr.bf16.mxu0 0
          %3061 = vmatpush1.bf16.msra.mxu0 %v2863
          %3062 = vmatprep.subr.bf16.mxu0 0
          %3063 = vmatpush1.bf16.msra.mxu0 %v2864
          %3064 = vmatprep.subr.bf16.mxu0 0
          %3065 = vmatpush1.bf16.msra.mxu0 %v2865
          %3066 = vmatprep.mubr.bf16.mxu0 %v2346
          %3067 = vmatmul.mubr.bf16.gmra.mrb[0].mxu0 %v2345
          %v3068 = vpop.f32.mrb[0].mxu0
          %v3069 = vadd.f32 %v3029, %v3068
          %v3070 = vpop.f32.mrb[0].mxu0
          %v3071 = vpop.f32.mrb[0].mxu0
          %v3072 = vpop.f32.mrb[0].mxu0
          %3073 = vdwg.mxu0
          %3074 = vmatprep.subr.bf16.mxu0 0
          %3075 = vmatpush1.bf16.msra.mxu0 %v2866
          %3076 = vmatprep.subr.bf16.mxu0 0
          %3077 = vmatpush1.bf16.msra.mxu0 %v2867
          %3078 = vmatprep.subr.bf16.mxu0 0
          %3079 = vmatpush1.bf16.msra.mxu0 %v2868
          %3080 = vmatprep.subr.bf16.mxu0 0
          %3081 = vmatpush1.bf16.msra.mxu0 %v2869
          %3082 = vmatprep.subr.bf16.mxu0 0
          %3083 = vmatpush1.bf16.msra.mxu0 %v2870
          %3084 = vmatprep.subr.bf16.mxu0 0
          %3085 = vmatpush1.bf16.msra.mxu0 %v2871
          %3086 = vmatprep.subr.bf16.mxu0 0
          %3087 = vmatpush1.bf16.msra.mxu0 %v2872
          %3088 = vmatprep.subr.bf16.mxu0 0
          %3089 = vmatpush1.bf16.msra.mxu0 %v2873
          %3090 = vmatprep.subr.bf16.mxu0 0
          %3091 = vmatpush1.bf16.msra.mxu0 %v2874
          %3092 = vmatprep.subr.bf16.mxu0 0
          %3093 = vmatpush1.bf16.msra.mxu0 %v2875
          %3094 = vmatprep.subr.bf16.mxu0 0
          %3095 = vmatpush1.bf16.msra.mxu0 %v2876
          %3096 = vmatprep.subr.bf16.mxu0 0
          %3097 = vmatpush1.bf16.msra.mxu0 %v2877
          %3098 = vmatprep.subr.bf16.mxu0 0
          %3099 = vmatpush1.bf16.msra.mxu0 %v2878
          %3100 = vmatprep.subr.bf16.mxu0 0
          %3101 = vmatpush1.bf16.msra.mxu0 %v2879
          %3102 = vmatprep.subr.bf16.mxu0 0
          %3103 = vmatpush1.bf16.msra.mxu0 %v2880
          %3104 = vmatprep.subr.bf16.mxu0 0
          %3105 = vmatpush1.bf16.msra.mxu0 %v2881
          %3106 = vmatprep.mubr.bf16.mxu0 %v2348
          %3107 = vmatmul.mubr.bf16.gmra.mrb[0].mxu0 %v2347
          %v3108 = vpop.f32.mrb[0].mxu0
          %v3109 = vadd.f32 %v3069, %v3108
          %v3110 = vpop.f32.mrb[0].mxu0
          %v3111 = vpop.f32.mrb[0].mxu0
          %v3112 = vpop.f32.mrb[0].mxu0
          %3113 = vdwg.mxu0
          %3114 = vmatprep.subr.bf16.mxu0 0
          %3115 = vmatpush1.bf16.msra.mxu0 %v2882
          %3116 = vmatprep.subr.bf16.mxu0 0
          %3117 = vmatpush1.bf16.msra.mxu0 %v2883
          %3118 = vmatprep.subr.bf16.mxu0 0
          %3119 = vmatpush1.bf16.msra.mxu0 %v2884
          %3120 = vmatprep.subr.bf16.mxu0 0
          %3121 = vmatpush1.bf16.msra.mxu0 %v2885
          %3122 = vmatprep.subr.bf16.mxu0 0
          %3123 = vmatpush1.bf16.msra.mxu0 %v2886
          %3124 = vmatprep.subr.bf16.mxu0 0
          %3125 = vmatpush1.bf16.msra.mxu0 %v2887
          %3126 = vmatprep.subr.bf16.mxu0 0
          %3127 = vmatpush1.bf16.msra.mxu0 %v2888
          %3128 = vmatprep.subr.bf16.mxu0 0
          %3129 = vmatpush1.bf16.msra.mxu0 %v2889
          %3130 = vmatprep.subr.bf16.mxu0 0
          %3131 = vmatpush1.bf16.msra.mxu0 %v2890
          %3132 = vmatprep.subr.bf16.mxu0 0
          %3133 = vmatpush1.bf16.msra.mxu0 %v2891
          %3134 = vmatprep.subr.bf16.mxu0 0
          %3135 = vmatpush1.bf16.msra.mxu0 %v2892
          %3136 = vmatprep.subr.bf16.mxu0 0
          %3137 = vmatpush1.bf16.msra.mxu0 %v2893
          %3138 = vmatprep.subr.bf16.mxu0 0
          %3139 = vmatpush1.bf16.msra.mxu0 %v2894
          %3140 = vmatprep.subr.bf16.mxu0 0
          %3141 = vmatpush1.bf16.msra.mxu0 %v2895
          %3142 = vmatprep.subr.bf16.mxu0 0
          %3143 = vmatpush1.bf16.msra.mxu0 %v2896
          %3144 = vmatprep.subr.bf16.mxu0 0
          %3145 = vmatpush1.bf16.msra.mxu0 %v2897
          %3146 = vmatprep.mubr.bf16.mxu0 %v2350
          %3147 = vmatmul.mubr.bf16.gmra.mrb[0].mxu0 %v2349
          %v3148 = vpop.f32.mrb[0].mxu0
          %v3149 = vadd.f32 %v3109, %v3148
          %v3150 = vpop.f32.mrb[0].mxu0
          %v3151 = vpop.f32.mrb[0].mxu0
          %v3152 = vpop.f32.mrb[0].mxu0
          %3153 = vdwg.mxu0
          %3154 = vmatprep.subr.bf16.mxu0 0
          %3155 = vmatpush1.bf16.msra.mxu0 %v2898
          %3156 = vmatprep.subr.bf16.mxu0 0
          %3157 = vmatpush1.bf16.msra.mxu0 %v2899
          %3158 = vmatprep.subr.bf16.mxu0 0
          %3159 = vmatpush1.bf16.msra.mxu0 %v2900
          %3160 = vmatprep.subr.bf16.mxu0 0
          %3161 = vmatpush1.bf16.msra.mxu0 %v2901
          %3162 = vmatprep.subr.bf16.mxu0 0
          %3163 = vmatpush1.bf16.msra.mxu0 %v2902
          %3164 = vmatprep.subr.bf16.mxu0 0
          %3165 = vmatpush1.bf16.msra.mxu0 %v2903
          %3166 = vmatprep.subr.bf16.mxu0 0
          %3167 = vmatpush1.bf16.msra.mxu0 %v2904
          %3168 = vmatprep.subr.bf16.mxu0 0
          %3169 = vmatpush1.bf16.msra.mxu0 %v2905
          %3170 = vmatprep.subr.bf16.mxu0 0
          %3171 = vmatpush1.bf16.msra.mxu0 %v2906
          %3172 = vmatprep.subr.bf16.mxu0 0
          %3173 = vmatpush1.bf16.msra.mxu0 %v2907
          %3174 = vmatprep.subr.bf16.mxu0 0
          %3175 = vmatpush1.bf16.msra.mxu0 %v2908
          %3176 = vmatprep.subr.bf16.mxu0 0
          %3177 = vmatpush1.bf16.msra.mxu0 %v2909
          %3178 = vmatprep.subr.bf16.mxu0 0
          %3179 = vmatpush1.bf16.msra.mxu0 %v2910
          %3180 = vmatprep.subr.bf16.mxu0 0
          %3181 = vmatpush1.bf16.msra.mxu0 %v2911
          %3182 = vmatprep.subr.bf16.mxu0 0
          %3183 = vmatpush1.bf16.msra.mxu0 %v2912
          %3184 = vmatprep.subr.bf16.mxu0 0
          %3185 = vmatpush1.bf16.msra.mxu0 %v2913
          %3186 = vmatprep.mubr.bf16.mxu0 %v2352
          %3187 = vmatmul.mubr.bf16.gmra.mrb[0].mxu0 %v2351
          %v3188 = vpop.f32.mrb[0].mxu0
          %v3189 = vadd.f32 %v3149, %v3188
          %v3190 = vpop.f32.mrb[0].mxu0
          %v3191 = vpop.f32.mrb[0].mxu0
          %v3192 = vpop.f32.mrb[0].mxu0
          %3193 = vdwg.mxu0
          %3194 = vst [vmem:[%s392] sm:$0x1] %v3189
        $region84: #{double_image_model_forward.1} parent=47 // pred_fallthru
          _
        %s3195 = sand.u32 %s201, 1
        %s3196 = scalar_lea.sflag [#allocation5], %s3195
        %s3197 = sand.u32 %s201, 1
        %s3198 = scalar_lea.vmem [#allocation15], %s3197
        // Predicated region
        $region85: #{double_image_model_forward.1} parent=47 // pred_check
          %p3199 = pneg %p211
        $region86: #{double_image_model_forward.1} parent=47 // pred_check_branch
          %3201 = sbr.rel (%p3199) target = $region88
        $region87: #{double_image_model_forward.1} parent=47 // pred_region
          %s3203 = ssub.s32 16, 16
          %3204 = vsyncadd %s3196, %s3203
          %s3205 = smul.addr %s31, 16
          %s3206 = scalar_lea.hbm %s7, %s3205
          %s3208 = sshll.u32 %s3198, 4
          %s3209 = int_to_ptr.vmem [resolvable:$true] %s3208
          %3211 = dma.vmem_to_hbm [thread:$0]  %s3209, 16, %s3206, %s3196
        $region88: #{double_image_model_forward.1} parent=47 // pred_fallthru
          _
      $region48: #{double_image_model_forward.1} parent=5 // pred_fallthru
        _
      %p3212 = scmp.le.s32.totalorder 2, %s22
      // Predicated region
      $region89: #{double_image_model_forward.1} parent=5 // pred_check
        %p3213 = pneg %p3212
      $region90: #{double_image_model_forward.1} parent=5 // pred_check_branch
        %3215 = sbr.rel (%p3213) target = $region92
      $region91: #{double_image_model_forward.1} parent=5 // pred_region
        %s3216 = ssub.s32 %s22, 2
        // Predicated region
        $region93: #{double_image_model_forward.1} parent=91 // pred_check
          %p3217 = pneg %p217
        $region94: #{double_image_model_forward.1} parent=91 // pred_check_branch
          %3219 = sbr.rel (%p3217) target = $region96
        $region95: #{double_image_model_forward.1} parent=91 // pred_region
          %s3220 = sand.u32 %s202, 1
          %s3221 = scalar_lea.sflag [#allocation5], %s3220
          %s3222 = sand.u32 %s202, 1
          %s3223 = scalar_lea.vmem [#allocation15], %s3222
          %3224 = dma.done %s3221, 16
        $region96: #{double_image_model_forward.1} parent=91 // pred_fallthru
          _
      $region92: #{double_image_model_forward.1} parent=5 // pred_fallthru
        _
    $region6: #{double_image_model_forward.1} parent=1 // loop_footer
      %s26 = sadd.s32 1, %s22
    $region7: #{double_image_model_forward.1} parent=1 // loop_footer_branch
      %21 = sbr.rel target = $region3
    $region8: #{double_image_model_forward.1} parent=1 // loop_exit
      _
    %3225 = vsyncpa [#allocation4], 1
    %s3226 = scalar_lea.sflag [#allocation4], 1
    %3227 = vsyncpa %s3226, 1
    %3228 = vsyncpa [#allocation7], 1
    %3229 = vsyncpa [#allocation10], 1
    %3230 = vsyncpa [#allocation13], 1
    %3231 = vsyncpa [#allocation5], 1
    %s3232 = scalar_lea.sflag [#allocation5], 1
    %3233 = vsyncpa %s3232, 1

</llo_original>
